<compile_context>
chip_gen: v7x
topology: tpu7x:2x2x1
jax: 0.10.0
libtpu: 0.0.40
codegen_flags: <defaults>
</compile_context>

<pallas_src>
import functools

import jax
import jax.numpy as jnp
from jax import lax
from jax.experimental import pallas as pl
from jax.experimental.pallas import tpu as pltpu


def _resconv1d_kernel(xm_ref, lh_ref, rh_ref, w_ref, b_ref, o_ref, acc_ref,
                      *, neg_slope, pad):
    # xm_ref:  (1, T, C)   main L-tile, native dtype, channels on lanes
    # lh_ref:  (1, HP, C)  HP rows just left of the tile (clamped at the array edge)
    # rh_ref:  (1, HP, C)  HP rows just right of the tile (clamped at the array edge)
    # w_ref:   (K, C, C)   conv taps, (tap, c_in, c_out)
    # b_ref:   (1, C)      bias, f32
    # o_ref:   (1, T, C)   output tile (residual + activated conv)
    # acc_ref: (T, C)      f32 accumulator scratch
    T = o_ref.shape[1]
    K = w_ref.shape[0]
    HP = lh_ref.shape[1]

    j = pl.program_id(1)
    n_j = pl.num_programs(1)

    xm = xm_ref[0]                                     # (T, C) native dtype -> MXU operand

    # Centre tap initialises the accumulator with the bias folded in.
    acc_ref[...] = jnp.dot(xm, w_ref[pad],
                           preferred_element_type=jnp.float32) + b_ref[...]

    # Side taps: aligned matmul on the main tile; the tap shift is applied to the f32
    # output slice only (no relayout of the packed bf16 input).
    for t in range(K):
        s = t - pad
        if s == 0:
            continue
        q = jnp.dot(xm, w_ref[t], preferred_element_type=jnp.float32)   # (T, C) f32
        if s < 0:
            acc_ref[-s:, :] += q[:T + s, :]
        else:
            acc_ref[:T - s, :] += q[s:, :]

    if pad > 0:
        # Left-halo rows feed the first `pad` output rows; for the first tile the conv
        # zero-padding makes that contribution zero, so the work is skipped at runtime.
        @pl.when(j > 0)
        def _():
            lh = lh_ref[0]                                               # (HP, C)
            for t in range(pad):
                m = pad - t
                acc_ref[:m, :] += jnp.dot(lh[HP - m:, :], w_ref[t],
                                          preferred_element_type=jnp.float32)

        # Right-halo rows feed the last `pad` output rows; skipped for the last tile.
        @pl.when(j < n_j - 1)
        def _():
            rh = rh_ref[0]                                               # (HP, C)
            for t in range(pad + 1, K):
                s = t - pad
                acc_ref[T - s:, :] += jnp.dot(rh[:s, :], w_ref[t],
                                              preferred_element_type=jnp.float32)

    # Epilogue: LeakyReLU + residual, one lane-dense store.
    acc = acc_ref[...]
    act = jnp.where(acc > 0, acc, neg_slope * acc)
    if o_ref.dtype == jnp.bfloat16:
        # bf16 VALU on v6e/v7x: do the residual add in bf16 (output is bf16 anyway).
        o_ref[0, :, :] = xm + act.astype(jnp.bfloat16)
    else:
        o_ref[0, :, :] = (xm.astype(jnp.float32) + act).astype(o_ref.dtype)


def _halo_rows(dtype):
    """Native sublane tile depth for this dtype: 8 rows (f32), 16 rows (bf16)."""
    itemsize = jnp.dtype(dtype).itemsize
    return 8 * max(1, 4 // itemsize)


def _pick_l_tile(L, n_batch, row_tile, max_tile=1024, min_steps=4):
    """Largest row_tile-multiple divisor of L that is <= max_tile, preferring tiles
    that still leave >= min_steps grid steps (keeps both v7x TensorCores fed)."""
    cands = [t for t in range(row_tile, min(L, max_tile) + 1, row_tile) if L % t == 0]
    if not cands:
        # TODO(synk): L with no divisor <= max_tile (e.g. 8 * prime) falls back to a
        # single tile instead of a masked tail.
        return L
    best = max(cands)
    for t in sorted(cands, reverse=True):
        if n_batch * (L // t) >= min_steps:
            best = t
            break
    return best


def prepare_params(weight, bias):
    """PyTorch Conv1d (C_out, C_in, K) weight / (C,) bias -> kernel layout.

    Hoist to parameter-load time so stacked ResConv1d layers do not pay the transpose
    per call."""
    c_out, c_in, K = weight.shape
    del c_in, K
    w_kio = jnp.transpose(weight, (2, 1, 0))          # (K, C_in, C_out): c_out on lanes
    b2 = bias.astype(jnp.float32).reshape(1, c_out)
    return w_kio, b2


@functools.partial(jax.jit, static_argnames=("neg_slope", "l_tile"))
def res_conv1d_nlc(x_nlc, w_kio, b2, *, neg_slope=0.1, l_tile=None):
    """Core ResConv1d: NLC activations in / NLC out, pre-transposed parameters."""
    N, L, C = x_nlc.shape
    K, c_in, c_out = w_kio.shape
    assert c_in == C and c_out == C, "ResConv1d uses n_channels -> n_channels"
    assert K % 2 == 1, "padding=(K-1)//2 only preserves length for odd kernel sizes"
    pad = (K - 1) // 2

    HP = _halo_rows(x_nlc.dtype)
    assert pad <= HP, f"kernel sizes up to {2 * HP + 1} supported for this dtype"
    assert L % HP == 0, f"sequence length must be a multiple of {HP} for this dtype"

    T = l_tile if l_tile is not None else _pick_l_tile(L, N, HP)
    assert L % T == 0 and T % HP == 0, "L-tile must divide L and be a multiple of HP"
    assert pad < T
    n_lt = L // T

    kernel = functools.partial(_resconv1d_kernel, neg_slope=neg_slope, pad=pad)

    out_nlc = pl.pallas_call(
        kernel,
        out_shape=jax.ShapeDtypeStruct((N, L, C), x_nlc.dtype),
        grid_spec=pltpu.PrefetchScalarGridSpec(
            num_scalar_prefetch=0,
            grid=(N, n_lt),
            in_specs=[
                # Main tile: channels lane-dense, length on sublanes.
                pl.BlockSpec((1, T, C), lambda n, j: (n, j, 0)),
                # Left halo: HP rows ending at the tile start (clamped at the edge;
                # only consumed when j > 0).
                pl.BlockSpec((1, HP, C),
                             lambda n, j: (n, jnp.maximum(j * (T // HP) - 1, 0), 0)),
                # Right halo: HP rows starting at the tile end (clamped at the edge;
                # only consumed when j < n_j - 1).
                pl.BlockSpec((1, HP, C),
                             lambda n, j: (n, jnp.minimum((j + 1) * (T // HP),
                                                          L // HP - 1), 0)),
                # Weights / bias: constant block index -> fetched once, kept in VMEM.
                pl.BlockSpec((K, C, C), lambda n, j: (0, 0, 0)),
                pl.BlockSpec((1, C), lambda n, j: (0, 0)),
            ],
            out_specs=pl.BlockSpec((1, T, C), lambda n, j: (n, j, 0)),
            scratch_shapes=[pltpu.VMEM((T, C), jnp.float32)],
        ),
        compiler_params=pltpu.CompilerParams(
            dimension_semantics=("parallel", "parallel"),
            vmem_limit_bytes=48 * 1024 * 1024,
        ),
    )(x_nlc, x_nlc, x_nlc, w_kio, b2)
    return out_nlc


def res_conv1d(x_ncl, weight, bias, *, neg_slope=0.1, l_tile=None):
    """ResConv1d forward: x + LeakyReLU(Conv1d(x)), PyTorch NCL layout in/out.

    x_ncl:  (N, C, L);  weight: (C_out, C_in, K) PyTorch Conv1d weight;  bias: (C,)
    """
    w_kio, b2 = prepare_params(weight, bias)
    x_nlc = jnp.transpose(x_ncl, (0, 2, 1))
    out_nlc = res_conv1d_nlc(x_nlc, w_kio, b2, neg_slope=neg_slope, l_tile=l_tile)
    return jnp.transpose(out_nlc, (0, 2, 1))


def _reference(x_ncl, weight, bias, *, neg_slope):
    """Pure-JAX f32 reference (lax conv, NCL)."""
    K = weight.shape[-1]
    pad = (K - 1) // 2
    xf = x_ncl.astype(jnp.float32)
    wf = weight.astype(jnp.float32)
    bf = bias.astype(jnp.float32)
    y = lax.conv_general_dilated(
        xf, wf, window_strides=(1,), padding=[(pad, pad)],
        dimension_numbers=("NCH", "OIH", "NCH"))
    y = y + bf[None, :, None]
    y = jnp.where(y > 0, y, neg_slope * y)
    return xf + y


if __name__ == "__main__":
    key = jax.random.PRNGKey(0)
    k1, k2, k3, k4, k5, k6 = jax.random.split(key, 6)

    # Check 1: bf16 params/activations (MXU-native path), module-default K=5,
    #          3 L-tiles of 128 -> exercises left/interior/right halo handling.
    N, C, L, K = 2, 128, 384, 5
    x = jax.random.normal(k1, (N, C, L), dtype=jnp.float32).astype(jnp.bfloat16)
    w = (jax.random.normal(k2, (C, C, K), dtype=jnp.float32) * 0.05).astype(jnp.bfloat16)
    b = (jax.random.normal(k3, (C,), dtype=jnp.float32) * 0.1).astype(jnp.bfloat16)

    out = jax.block_until_ready(res_conv1d(x, w, b, neg_slope=0.1, l_tile=128))
    ref = _reference(x, w, b, neg_slope=0.1)
    assert out.shape == (N, C, L)
    assert jnp.allclose(out.astype(jnp.float32), ref, atol=5e-2, rtol=5e-2), \
        "bf16 kernel mismatch vs reference"

    # Check 2: f32 path, K=3, auto tile pick (HP=8; picks T=64 -> 4 grid steps).
    N2, C2, L2, K2 = 1, 128, 256, 3
    x2 = jax.random.normal(k4, (N2, C2, L2), dtype=jnp.float32)
    w2 = jax.random.normal(k5, (C2, C2, K2), dtype=jnp.float32) * 0.05
    b2 = jax.random.normal(k6, (C2,), dtype=jnp.float32) * 0.1

    out2 = jax.block_until_ready(res_conv1d(x2, w2, b2, neg_slope=0.1))
    ref2 = _reference(x2, w2, b2, neg_slope=0.1)
    assert jnp.allclose(out2, ref2, atol=2e-2, rtol=2e-2), "f32 kernel mismatch vs reference"

    print("KERNEL_OK")
</pallas_src>

<mosaic_0001>
module attributes {stable_mosaic.version = 11 : i64} {
  func.func @_resconv1d_kernel(%arg0: i32, %arg1: i32, %arg2: memref<1x128x128xbf16, #tpu.memory_space<vmem>>, %arg3: memref<1x16x128xbf16, #tpu.memory_space<vmem>>, %arg4: memref<1x16x128xbf16, #tpu.memory_space<vmem>>, %arg5: memref<5x128x128xbf16, #tpu.memory_space<vmem>>, %arg6: memref<1x128xf32, #tpu.memory_space<vmem>>, %arg7: memref<1x128x128xbf16, #tpu.memory_space<vmem>>, %arg8: memref<128x128xf32, #tpu.memory_space<vmem>>) attributes {dimension_semantics = [#tpu.dimension_semantics<parallel>, #tpu.dimension_semantics<parallel>], iteration_bounds = array<i64: 2, 3>, scalar_prefetch = 0 : i64, scratch_operands = 1 : i64, tpu.core_type = #tpu.core_type<tc>, window_params = [{transform_indices = @transform_0, window_bounds = array<i64: 1, 128, 128>}, {transform_indices = @transform_1, window_bounds = array<i64: 1, 16, 128>}, {transform_indices = @transform_2, window_bounds = array<i64: 1, 16, 128>}, {pipeline_mode = #tpu.pipeline_mode<synchronous>, transform_indices = @transform_3, window_bounds = array<i64: 5, 128, 128>}, {pipeline_mode = #tpu.pipeline_mode<synchronous>, transform_indices = @transform_4, window_bounds = array<i64: 1, 128>}, {transform_indices = @transform_5, window_bounds = array<i64: 1, 128, 128>}]} {
    %c0 = arith.constant 0 : index
    %c0_0 = arith.constant 0 : index
    %c0_1 = arith.constant 0 : index
    %0 = vector.load %arg2[%c0, %c0_0, %c0_1] : memref<1x128x128xbf16, #tpu.memory_space<vmem>>, vector<1x128x128xbf16>
    %1 = vector.shape_cast %0 : vector<1x128x128xbf16> to vector<128x128xbf16>
    %c2 = arith.constant 2 : index
    %c0_2 = arith.constant 0 : index
    %c0_3 = arith.constant 0 : index
    %2 = vector.load %arg5[%c2, %c0_2, %c0_3] : memref<5x128x128xbf16, #tpu.memory_space<vmem>>, vector<1x128x128xbf16>
    %3 = vector.shape_cast %2 : vector<1x128x128xbf16> to vector<128x128xbf16>
    %cst = arith.constant dense<0.000000e+00> : vector<128x128xf32>
    %4 = tpu.matmul %1, %3, %cst {dimension_numbers = #tpu.dot_dimension_numbers<[1], [0], [0], [1], [0, 0, 1, 1], [], []>} : vector<128x128xbf16>, vector<128x128xbf16>, vector<128x128xf32> -> vector<128x128xf32>
    %c0_4 = arith.constant 0 : index
    %c0_5 = arith.constant 0 : index
    %5 = vector.load %arg6[%c0_4, %c0_5] : memref<1x128xf32, #tpu.memory_space<vmem>>, vector<1x128xf32>
    %6 = vector.broadcast %5 : vector<1x128xf32> to vector<128x128xf32>
    %7 = arith.addf %4, %6 : vector<128x128xf32>
    %c0_6 = arith.constant 0 : index
    %c0_7 = arith.constant 0 : index
    %8 = vector.load %arg8[%c0_6, %c0_7] : memref<128x128xf32, #tpu.memory_space<vmem>>, vector<128x128xf32>
    tpu.vector_store %arg8[%c0_6, %c0_7], %7 {strides = array<i32>} : memref<128x128xf32, #tpu.memory_space<vmem>>, vector<128x128xf32>,
    %c0_8 = arith.constant 0 : index
    %c0_9 = arith.constant 0 : index
    %c0_10 = arith.constant 0 : index
    %9 = vector.load %arg5[%c0_8, %c0_9, %c0_10] : memref<5x128x128xbf16, #tpu.memory_space<vmem>>, vector<1x128x128xbf16>
    %10 = vector.shape_cast %9 : vector<1x128x128xbf16> to vector<128x128xbf16>
    %cst_11 = arith.constant dense<0.000000e+00> : vector<128x128xf32>
    %11 = tpu.matmul %1, %10, %cst_11 {dimension_numbers = #tpu.dot_dimension_numbers<[1], [0], [0], [1], [0, 0, 1, 1], [], []>} : vector<128x128xbf16>, vector<128x128xbf16>, vector<128x128xf32> -> vector<128x128xf32>
    %c2_12 = arith.constant 2 : index
    %c0_13 = arith.constant 0 : index
    %12 = vector.load %arg8[%c2_12, %c0_13] : memref<128x128xf32, #tpu.memory_space<vmem>>, vector<126x128xf32>
    %13 = vector.extract_strided_slice %11 {offsets = [0, 0], sizes = [126, 128], strides = [1, 1]} : vector<128x128xf32> to vector<126x128xf32>
    %14 = arith.addf %12, %13 : vector<126x128xf32>
    %c2_14 = arith.constant 2 : index
    %c0_15 = arith.constant 0 : index
    %15 = vector.load %arg8[%c2_14, %c0_15] : memref<128x128xf32, #tpu.memory_space<vmem>>, vector<126x128xf32>
    tpu.vector_store %arg8[%c2_14, %c0_15], %14 {strides = array<i32>} : memref<128x128xf32, #tpu.memory_space<vmem>>, vector<126x128xf32>,
    %c1 = arith.constant 1 : index
    %c0_16 = arith.constant 0 : index
    %c0_17 = arith.constant 0 : index
    %16 = vector.load %arg5[%c1, %c0_16, %c0_17] : memref<5x128x128xbf16, #tpu.memory_space<vmem>>, vector<1x128x128xbf16>
    %17 = vector.shape_cast %16 : vector<1x128x128xbf16> to vector<128x128xbf16>
    %cst_18 = arith.constant dense<0.000000e+00> : vector<128x128xf32>
    %18 = tpu.matmul %1, %17, %cst_18 {dimension_numbers = #tpu.dot_dimension_numbers<[1], [0], [0], [1], [0, 0, 1, 1], [], []>} : vector<128x128xbf16>, vector<128x128xbf16>, vector<128x128xf32> -> vector<128x128xf32>
    %c1_19 = arith.constant 1 : index
    %c0_20 = arith.constant 0 : index
    %19 = vector.load %arg8[%c1_19, %c0_20] : memref<128x128xf32, #tpu.memory_space<vmem>>, vector<127x128xf32>
    %20 = vector.extract_strided_slice %18 {offsets = [0, 0], sizes = [127, 128], strides = [1, 1]} : vector<128x128xf32> to vector<127x128xf32>
    %21 = arith.addf %19, %20 : vector<127x128xf32>
    %c1_21 = arith.constant 1 : index
    %c0_22 = arith.constant 0 : index
    %22 = vector.load %arg8[%c1_21, %c0_22] : memref<128x128xf32, #tpu.memory_space<vmem>>, vector<127x128xf32>
    tpu.vector_store %arg8[%c1_21, %c0_22], %21 {strides = array<i32>} : memref<128x128xf32, #tpu.memory_space<vmem>>, vector<127x128xf32>,
    %c3 = arith.constant 3 : index
    %c0_23 = arith.constant 0 : index
    %c0_24 = arith.constant 0 : index
    %23 = vector.load %arg5[%c3, %c0_23, %c0_24] : memref<5x128x128xbf16, #tpu.memory_space<vmem>>, vector<1x128x128xbf16>
    %24 = vector.shape_cast %23 : vector<1x128x128xbf16> to vector<128x128xbf16>
    %cst_25 = arith.constant dense<0.000000e+00> : vector<128x128xf32>
    %25 = tpu.matmul %1, %24, %cst_25 {dimension_numbers = #tpu.dot_dimension_numbers<[1], [0], [0], [1], [0, 0, 1, 1], [], []>} : vector<128x128xbf16>, vector<128x128xbf16>, vector<128x128xf32> -> vector<128x128xf32>
    %c0_26 = arith.constant 0 : index
    %c0_27 = arith.constant 0 : index
    %26 = vector.load %arg8[%c0_26, %c0_27] : memref<128x128xf32, #tpu.memory_space<vmem>>, vector<127x128xf32>
    %27 = vector.extract_strided_slice %25 {offsets = [1, 0], sizes = [127, 128], strides = [1, 1]} : vector<128x128xf32> to vector<127x128xf32>
    %28 = arith.addf %26, %27 : vector<127x128xf32>
    %c0_28 = arith.constant 0 : index
    %c0_29 = arith.constant 0 : index
    %29 = vector.load %arg8[%c0_28, %c0_29] : memref<128x128xf32, #tpu.memory_space<vmem>>, vector<127x128xf32>
    tpu.vector_store %arg8[%c0_28, %c0_29], %28 {strides = array<i32>} : memref<128x128xf32, #tpu.memory_space<vmem>>, vector<127x128xf32>,
    %c4 = arith.constant 4 : index
    %c0_30 = arith.constant 0 : index
    %c0_31 = arith.constant 0 : index
    %30 = vector.load %arg5[%c4, %c0_30, %c0_31] : memref<5x128x128xbf16, #tpu.memory_space<vmem>>, vector<1x128x128xbf16>
    %31 = vector.shape_cast %30 : vector<1x128x128xbf16> to vector<128x128xbf16>
    %cst_32 = arith.constant dense<0.000000e+00> : vector<128x128xf32>
    %32 = tpu.matmul %1, %31, %cst_32 {dimension_numbers = #tpu.dot_dimension_numbers<[1], [0], [0], [1], [0, 0, 1, 1], [], []>} : vector<128x128xbf16>, vector<128x128xbf16>, vector<128x128xf32> -> vector<128x128xf32>
    %c0_33 = arith.constant 0 : index
    %c0_34 = arith.constant 0 : index
    %33 = vector.load %arg8[%c0_33, %c0_34] : memref<128x128xf32, #tpu.memory_space<vmem>>, vector<126x128xf32>
    %34 = vector.extract_strided_slice %32 {offsets = [2, 0], sizes = [126, 128], strides = [1, 1]} : vector<128x128xf32> to vector<126x128xf32>
    %35 = arith.addf %33, %34 : vector<126x128xf32>
    %c0_35 = arith.constant 0 : index
    %c0_36 = arith.constant 0 : index
    %36 = vector.load %arg8[%c0_35, %c0_36] : memref<128x128xf32, #tpu.memory_space<vmem>>, vector<126x128xf32>
    tpu.vector_store %arg8[%c0_35, %c0_36], %35 {strides = array<i32>} : memref<128x128xf32, #tpu.memory_space<vmem>>, vector<126x128xf32>,
    %c0_i32 = arith.constant 0 : i32
    %37 = arith.cmpi sgt, %arg1, %c0_i32 : i32
    %38 = arith.extui %37 : i1 to i32
    %c0_i32_37 = arith.constant 0 : i32
    %39 = arith.cmpi ne, %38, %c0_i32_37 : i32
    scf.if %39 {
      %c0_46 = arith.constant 0 : index
      %c0_47 = arith.constant 0 : index
      %c0_48 = arith.constant 0 : index
      %54 = vector.load %arg3[%c0_46, %c0_47, %c0_48] : memref<1x16x128xbf16, #tpu.memory_space<vmem>>, vector<1x16x128xbf16>
      %55 = vector.shape_cast %54 : vector<1x16x128xbf16> to vector<16x128xbf16>
      %c0_49 = arith.constant 0 : index
      %c0_50 = arith.constant 0 : index
      %56 = vector.load %arg8[%c0_49, %c0_50] : memref<128x128xf32, #tpu.memory_space<vmem>>, vector<2x128xf32>
      %57 = vector.extract_strided_slice %55 {offsets = [14, 0], sizes = [2, 128], strides = [1, 1]} : vector<16x128xbf16> to vector<2x128xbf16>
      %c0_51 = arith.constant 0 : index
      %c0_52 = arith.constant 0 : index
      %c0_53 = arith.constant 0 : index
      %58 = vector.load %arg5[%c0_51, %c0_52, %c0_53] : memref<5x128x128xbf16, #tpu.memory_space<vmem>>, vector<1x128x128xbf16>
      %59 = vector.shape_cast %58 : vector<1x128x128xbf16> to vector<128x128xbf16>
      %cst_54 = arith.constant dense<0.000000e+00> : vector<2x128xf32>
      %60 = tpu.matmul %57, %59, %cst_54 {dimension_numbers = #tpu.dot_dimension_numbers<[1], [0], [0], [1], [0, 0, 1, 1], [], []>} : vector<2x128xbf16>, vector<128x128xbf16>, vector<2x128xf32> -> vector<2x128xf32>
      %61 = arith.addf %56, %60 : vector<2x128xf32>
      %c0_55 = arith.constant 0 : index
      %c0_56 = arith.constant 0 : index
      %62 = vector.load %arg8[%c0_55, %c0_56] : memref<128x128xf32, #tpu.memory_space<vmem>>, vector<2x128xf32>
      tpu.vector_store %arg8[%c0_55, %c0_56], %61 {strides = array<i32>} : memref<128x128xf32, #tpu.memory_space<vmem>>, vector<2x128xf32>,
      %c0_57 = arith.constant 0 : index
      %c0_58 = arith.constant 0 : index
      %63 = vector.load %arg8[%c0_57, %c0_58] : memref<128x128xf32, #tpu.memory_space<vmem>>, vector<1x128xf32>
      %64 = vector.extract_strided_slice %55 {offsets = [15, 0], sizes = [1, 128], strides = [1, 1]} : vector<16x128xbf16> to vector<1x128xbf16>
      %c1_59 = arith.constant 1 : index
      %c0_60 = arith.constant 0 : index
      %c0_61 = arith.constant 0 : index
      %65 = vector.load %arg5[%c1_59, %c0_60, %c0_61] : memref<5x128x128xbf16, #tpu.memory_space<vmem>>, vector<1x128x128xbf16>
      %66 = vector.shape_cast %65 : vector<1x128x128xbf16> to vector<128x128xbf16>
      %cst_62 = arith.constant dense<0.000000e+00> : vector<1x128xf32>
      %67 = tpu.matmul %64, %66, %cst_62 {dimension_numbers = #tpu.dot_dimension_numbers<[1], [0], [0], [1], [0, 0, 1, 1], [], []>} : vector<1x128xbf16>, vector<128x128xbf16>, vector<1x128xf32> -> vector<1x128xf32>
      %68 = arith.addf %63, %67 : vector<1x128xf32>
      %c0_63 = arith.constant 0 : index
      %c0_64 = arith.constant 0 : index
      %69 = vector.load %arg8[%c0_63, %c0_64] : memref<128x128xf32, #tpu.memory_space<vmem>>, vector<1x128xf32>
      tpu.vector_store %arg8[%c0_63, %c0_64], %68 {strides = array<i32>} : memref<128x128xf32, #tpu.memory_space<vmem>>, vector<1x128xf32>,
    } else {
    }
    %c2_i32 = arith.constant 2 : i32
    %40 = arith.cmpi slt, %arg1, %c2_i32 : i32
    %41 = arith.extui %40 : i1 to i32
    %c0_i32_38 = arith.constant 0 : i32
    %42 = arith.cmpi ne, %41, %c0_i32_38 : i32
    scf.if %42 {
      %c0_46 = arith.constant 0 : index
      %c0_47 = arith.constant 0 : index
      %c0_48 = arith.constant 0 : index
      %54 = vector.load %arg4[%c0_46, %c0_47, %c0_48] : memref<1x16x128xbf16, #tpu.memory_space<vmem>>, vector<1x16x128xbf16>
      %55 = vector.shape_cast %54 : vector<1x16x128xbf16> to vector<16x128xbf16>
      %c127 = arith.constant 127 : index
      %c0_49 = arith.constant 0 : index
      %56 = vector.load %arg8[%c127, %c0_49] : memref<128x128xf32, #tpu.memory_space<vmem>>, vector<1x128xf32>
      %57 = vector.extract_strided_slice %55 {offsets = [0, 0], sizes = [1, 128], strides = [1, 1]} : vector<16x128xbf16> to vector<1x128xbf16>
      %c3_50 = arith.constant 3 : index
      %c0_51 = arith.constant 0 : index
      %c0_52 = arith.constant 0 : index
      %58 = vector.load %arg5[%c3_50, %c0_51, %c0_52] : memref<5x128x128xbf16, #tpu.memory_space<vmem>>, vector<1x128x128xbf16>
      %59 = vector.shape_cast %58 : vector<1x128x128xbf16> to vector<128x128xbf16>
      %cst_53 = arith.constant dense<0.000000e+00> : vector<1x128xf32>
      %60 = tpu.matmul %57, %59, %cst_53 {dimension_numbers = #tpu.dot_dimension_numbers<[1], [0], [0], [1], [0, 0, 1, 1], [], []>} : vector<1x128xbf16>, vector<128x128xbf16>, vector<1x128xf32> -> vector<1x128xf32>
      %61 = arith.addf %56, %60 : vector<1x128xf32>
      %c127_54 = arith.constant 127 : index
      %c0_55 = arith.constant 0 : index
      %62 = vector.load %arg8[%c127_54, %c0_55] : memref<128x128xf32, #tpu.memory_space<vmem>>, vector<1x128xf32>
      tpu.vector_store %arg8[%c127_54, %c0_55], %61 {strides = array<i32>} : memref<128x128xf32, #tpu.memory_space<vmem>>, vector<1x128xf32>,
      %c126 = arith.constant 126 : index
      %c0_56 = arith.constant 0 : index
      %63 = vector.load %arg8[%c126, %c0_56] : memref<128x128xf32, #tpu.memory_space<vmem>>, vector<2x128xf32>
      %64 = vector.extract_strided_slice %55 {offsets = [0, 0], sizes = [2, 128], strides = [1, 1]} : vector<16x128xbf16> to vector<2x128xbf16>
      %c4_57 = arith.constant 4 : index
      %c0_58 = arith.constant 0 : index
      %c0_59 = arith.constant 0 : index
      %65 = vector.load %arg5[%c4_57, %c0_58, %c0_59] : memref<5x128x128xbf16, #tpu.memory_space<vmem>>, vector<1x128x128xbf16>
      %66 = vector.shape_cast %65 : vector<1x128x128xbf16> to vector<128x128xbf16>
      %cst_60 = arith.constant dense<0.000000e+00> : vector<2x128xf32>
      %67 = tpu.matmul %64, %66, %cst_60 {dimension_numbers = #tpu.dot_dimension_numbers<[1], [0], [0], [1], [0, 0, 1, 1], [], []>} : vector<2x128xbf16>, vector<128x128xbf16>, vector<2x128xf32> -> vector<2x128xf32>
      %68 = arith.addf %63, %67 : vector<2x128xf32>
      %c126_61 = arith.constant 126 : index
      %c0_62 = arith.constant 0 : index
      %69 = vector.load %arg8[%c126_61, %c0_62] : memref<128x128xf32, #tpu.memory_space<vmem>>, vector<2x128xf32>
      tpu.vector_store %arg8[%c126_61, %c0_62], %68 {strides = array<i32>} : memref<128x128xf32, #tpu.memory_space<vmem>>, vector<2x128xf32>,
    } else {
    }
    %c0_39 = arith.constant 0 : index
    %c0_40 = arith.constant 0 : index
    %43 = vector.load %arg8[%c0_39, %c0_40] : memref<128x128xf32, #tpu.memory_space<vmem>>, vector<128x128xf32>
    %cst_41 = arith.constant 0.000000e+00 : f32
    %44 = vector.broadcast %cst_41 : f32 to vector<128x128xf32>
    %45 = arith.cmpf ogt, %43, %44 : vector<128x128xf32>
    %cst_42 = arith.constant 1.000000e-01 : f32
    %46 = vector.broadcast %cst_42 : f32 to vector<128x128xf32>
    %47 = arith.mulf %46, %43 : vector<128x128xf32>
    %48 = arith.select %45, %43, %47 : vector<128x128xi1>, vector<128x128xf32>
    %49 = arith.truncf %48 : vector<128x128xf32> to vector<128x128xbf16>
    %50 = arith.addf %1, %49 : vector<128x128xbf16>
    %c0_43 = arith.constant 0 : index
    %c0_44 = arith.constant 0 : index
    %c0_45 = arith.constant 0 : index
    %51 = vector.load %arg7[%c0_43, %c0_44, %c0_45] : memref<1x128x128xbf16, #tpu.memory_space<vmem>>, vector<1x128x128xbf16>
    %52 = vector.shape_cast %51 : vector<1x128x128xbf16> to vector<128x128xbf16>
    %53 = vector.shape_cast %50 : vector<128x128xbf16> to vector<1x128x128xbf16>
    tpu.vector_store %arg7[%c0_43, %c0_44, %c0_45], %53 {strides = array<i32>} : memref<1x128x128xbf16, #tpu.memory_space<vmem>>, vector<1x128x128xbf16>,
    return
  }
  func.func @transform_0(%arg0: i32, %arg1: i32) -> (i32, i32, i32) {
    %c0_i32 = arith.constant 0 : i32
    %c0_i32_0 = arith.constant 0 : i32
    return %arg0, %arg1, %c0_i32 : i32, i32, i32
  }
  func.func @transform_1(%arg0: i32, %arg1: i32) -> (i32, i32, i32) {
    %c8_i32 = arith.constant 8 : i32
    %0 = arith.muli %arg1, %c8_i32 : i32
    %c1_i32 = arith.constant 1 : i32
    %1 = arith.subi %0, %c1_i32 : i32
    %c0_i32 = arith.constant 0 : i32
    %2 = arith.maxsi %1, %c0_i32 : i32
    %c0_i32_0 = arith.constant 0 : i32
    %c0_i32_1 = arith.constant 0 : i32
    return %arg0, %2, %c0_i32_0 : i32, i32, i32
  }
  func.func @transform_2(%arg0: i32, %arg1: i32) -> (i32, i32, i32) {
    %c1_i32 = arith.constant 1 : i32
    %0 = arith.addi %arg1, %c1_i32 : i32
    %c8_i32 = arith.constant 8 : i32
    %1 = arith.muli %0, %c8_i32 : i32
    %c23_i32 = arith.constant 23 : i32
    %2 = arith.minsi %1, %c23_i32 : i32
    %c0_i32 = arith.constant 0 : i32
    %c0_i32_0 = arith.constant 0 : i32
    return %arg0, %2, %c0_i32 : i32, i32, i32
  }
  func.func @transform_3(%arg0: i32, %arg1: i32) -> (i32, i32, i32) {
    %c0_i32 = arith.constant 0 : i32
    %c0_i32_0 = arith.constant 0 : i32
    %c0_i32_1 = arith.constant 0 : i32
    %c0_i32_2 = arith.constant 0 : i32
    return %c0_i32, %c0_i32_0, %c0_i32_1 : i32, i32, i32
  }
  func.func @transform_4(%arg0: i32, %arg1: i32) -> (i32, i32) {
    %c0_i32 = arith.constant 0 : i32
    %c0_i32_0 = arith.constant 0 : i32
    %c0_i32_1 = arith.constant 0 : i32
    return %c0_i32, %c0_i32_0 : i32, i32
  }
  func.func @transform_5(%arg0: i32, %arg1: i32) -> (i32, i32, i32) {
    %c0_i32 = arith.constant 0 : i32
    %c0_i32_0 = arith.constant 0 : i32
    return %arg0, %arg1, %c0_i32 : i32, i32, i32
  }
}

</mosaic_0001>

<llo_original>
// kernel: res_conv1d_nlc.1
$region0: #{res_conv1d_nlc.1}
  #allocation0 [shape = 'u32[]', space=smem, size = 0x4, offset = 0x4, fixed_abs, tag = 'smem constant byte address 0x4 - core index']
  #allocation1 [shape = 'u32[144,128]{1,0:T(1,128)}', space=vmem, size = 0x12000, scoped, tag = 'internal scratch']
  #allocation2 [shape = 'f32[128,128]{1,0:T(8,128)}', space=vmem, size = 0x10000, scoped, tag = 'scratch operand']
  %s0 = inlined_call_operand.hbm [shape: bf16[2,384,128], index: 0, kind: input, shape index: {}, may-alias: {0,1,2}]
  %s1 = inlined_call_operand.hbm [shape: bf16[2,384,128], index: 1, kind: input, shape index: {}, may-alias: {0,1,2}]
  %s2 = inlined_call_operand.hbm [shape: bf16[2,384,128], index: 2, kind: input, shape index: {}, may-alias: {0,1,2}]
  %s3 = inlined_call_operand.hbm [shape: bf16[5,128,128], index: 3, kind: input, shape index: {}]
  %s4 = inlined_call_operand.vmem [shape: f32[1,128], index: 4, kind: input, shape index: {}]
  %s5 = inlined_call_operand.hbm [shape: bf16[2,384,128], index: 5, kind: output, shape index: {}]
  %s6 = sld [smem:[#allocation0]]
  $region77: #{res_conv1d_nlc.1} parent=0
    _
  %s8 = ssub.s32 1, %s6
  %s9 = scalar_select 0, %s8, %s6
  $region1: #{res_conv1d_nlc.1} parent=0
    #allocation3 [shape = 'u8[65536]{0}', space=vmem, size = 0x10000, scoped, tag = 'input window, operand 0']
    #allocation4 [shape = 's32[2]{0}', space=sflag, size = 0x8, scoped, tag = 'scoped memory for res_conv1d_nlc.1']
    #allocation5 [shape = 's32[2]{0}', space=sflag, size = 0x8, scoped, tag = 'scoped memory for res_conv1d_nlc.1']
    #allocation6 [shape = 'u8[8192]{0}', space=vmem, size = 0x2000, scoped, tag = 'input window, operand 1']
    #allocation7 [shape = 's32[2]{0}', space=sflag, size = 0x8, scoped, tag = 'scoped memory for res_conv1d_nlc.1']
    #allocation8 [shape = 'u8[8192]{0}', space=vmem, size = 0x2000, scoped, tag = 'input window, operand 2']
    #allocation9 [shape = 'u8[163840]{0}', space=vmem, size = 0x28000, scoped, tag = 'input window, operand 3, single buffered']
    #allocation10 [shape = 's32[1]{0}', space=sflag, size = 0x4, scoped, tag = 'scoped memory for res_conv1d_nlc.1']
    #allocation11 [shape = 'u8[65536]{0}', space=vmem, size = 0x10000, scoped, tag = 'output window, operand 0']
    %10 = vsyncpa [#allocation4], 0
    %s11 = scalar_lea.sflag [#allocation4], 1
    %12 = vsyncpa %s11, 0
    %13 = vsyncpa [#allocation7], 0
    %s14 = scalar_lea.sflag [#allocation7], 1
    %15 = vsyncpa %s14, 0
    %16 = vsyncpa [#allocation10], 0
    %17 = vsyncpa [#allocation5], 0
    %s18 = scalar_lea.sflag [#allocation5], 1
    %19 = vsyncpa %s18, 0
    loop: start=0, step=1, limit=8
    $region2: #{res_conv1d_nlc.1} parent=1 // loop_pre_header
      _
    $region3: #{res_conv1d_nlc.1} parent=1 // loop_header
      %s21 = sphi 0, %s25
      %p22 = scmp.ge.s32.totalorder %s21, 8
      %s28 = sphi 0, %s40
      %s29 = sphi 0, %s36
      %s30 = sphi 0, %s28
      %s31 = sphi 0, %s29
      %s32 = sphi 0, %s30
      %s33 = sphi 0, %s31
      %s45 = sphi 0, %s47
      %s48 = sphi 0, %s45
      %s49 = sphi 0, %s48
      %s65 = sphi 0, %s49
      %s81 = sphi 0, %s83
      %s84 = sphi 0, %s81
      %s85 = sphi 0, %s84
      %s101 = sphi 0, %s85
      %s117 = sphi 0, %s119
      %s120 = sphi 0, %s117
      %s121 = sphi 0, %s120
      %s137 = sphi 0, %s121
      %s141 = sphi 0, %s141
      %s143 = sphi 0, %s141
      %s144 = sphi 0, %s143
      %s158 = sphi 0, %s144
      %s162 = sphi 0, %s162
      %s164 = sphi 0, %s162
      %s165 = sphi 0, %s164
      %s179 = sphi 0, %s165
      %s187 = sphi 0, %s189
      %s190 = sphi 0, %s187
      %s191 = sphi 0, %s190
      %s207 = sphi 0, %s191
    $region4: #{res_conv1d_nlc.1} parent=1 // loop_header_branch
      %24 = sbr.rel (%p22) target = $region8
    $region5: #{res_conv1d_nlc.1} parent=1 // loop_body
      %s26 = ssub.s32 %s21, 1
      %s27 = ssub.s32 %s21, 2
      %s34 = sadd.s32 1, %s29
      %p35 = scmp.ge.s32.totalorder %s34, 3
      %s36 = scalar_select %p35, 0, %s34
      %s37 = sadd.s32 1, %s28
      %s38 = scalar_select %p35, %s37, %s28
      %p39 = scmp.ge.s32.totalorder %s38, 2
      %s40 = scalar_select %p39, 0, %s38
      %s41 = ssub.s32 %s28, %s40
      %s42 = ssub.s32 %s29, %s36
      %s43 = sor.u32 %s41, %s42
      %p44 = scmp.eq.s32.totalorder %s43, 0
      %s46 = sadd.s32 %s45, 1
      %s47 = scalar_select %p44, %s45, %s46
      %p50 = pneg %p44
      %p51 = scmp.eq.s32.totalorder %s21, 5
      %p52 = por %p50, %p51
      %p53 = scmp.ne.s32.totalorder %s45, %s48
      %p54 = scmp.eq.s32.totalorder %s21, 0
      %p55 = por %p53, %p54
      %p56 = scmp.ne.s32.totalorder %s45, %s48
      %p57 = scmp.eq.s32.totalorder %s26, 5
      %p58 = por %p56, %p57
      %p59 = scmp.ne.s32.totalorder %s48, %s49
      %p60 = scmp.eq.s32.totalorder %s26, 0
      %p61 = por %p59, %p60
      %p62 = scmp.ne.s32.totalorder %s48, %s49
      %p63 = scmp.eq.s32.totalorder %s27, 5
      %p64 = por %p62, %p63
      %p66 = scmp.ne.s32.totalorder %s49, %s65
      %p67 = scmp.eq.s32.totalorder %s27, 0
      %p68 = por %p66, %p67
      %s69 = smul.u32 %s29, 8
      %s70 = ssub.s32 %s69, 1
      %p71 = scmp.gt.s32.totalorder %s70, 0
      %s72 = scalar_select %p71, %s70, 0
      %s73 = smul.u32 %s36, 8
      %s74 = ssub.s32 %s73, 1
      %p75 = scmp.gt.s32.totalorder %s74, 0
      %s76 = scalar_select %p75, %s74, 0
      %s77 = ssub.s32 %s28, %s40
      %s78 = ssub.s32 %s72, %s76
      %s79 = sor.u32 %s77, %s78
      %p80 = scmp.eq.s32.totalorder %s79, 0
      %s82 = sadd.s32 %s81, 1
      %s83 = scalar_select %p80, %s81, %s82
      %p86 = pneg %p80
      %p87 = scmp.eq.s32.totalorder %s21, 5
      %p88 = por %p86, %p87
      %p89 = scmp.ne.s32.totalorder %s81, %s84
      %p90 = scmp.eq.s32.totalorder %s21, 0
      %p91 = por %p89, %p90
      %p92 = scmp.ne.s32.totalorder %s81, %s84
      %p93 = scmp.eq.s32.totalorder %s26, 5
      %p94 = por %p92, %p93
      %p95 = scmp.ne.s32.totalorder %s84, %s85
      %p96 = scmp.eq.s32.totalorder %s26, 0
      %p97 = por %p95, %p96
      %p98 = scmp.ne.s32.totalorder %s84, %s85
      %p99 = scmp.eq.s32.totalorder %s27, 5
      %p100 = por %p98, %p99
      %p102 = scmp.ne.s32.totalorder %s85, %s101
      %p103 = scmp.eq.s32.totalorder %s27, 0
      %p104 = por %p102, %p103
      %s105 = sadd.s32 %s29, 1
      %s106 = smul.u32 %s105, 8
      %p107 = scmp.lt.s32.totalorder %s106, 23
      %s108 = scalar_select %p107, %s106, 23
      %s109 = sadd.s32 %s36, 1
      %s110 = smul.u32 %s109, 8
      %p111 = scmp.lt.s32.totalorder %s110, 23
      %s112 = scalar_select %p111, %s110, 23
      %s113 = ssub.s32 %s28, %s40
      %s114 = ssub.s32 %s108, %s112
      %s115 = sor.u32 %s113, %s114
      %p116 = scmp.eq.s32.totalorder %s115, 0
      %s118 = sadd.s32 %s117, 1
      %s119 = scalar_select %p116, %s117, %s118
      %p122 = pneg %p116
      %p123 = scmp.eq.s32.totalorder %s21, 5
      %p124 = por %p122, %p123
      %p125 = scmp.ne.s32.totalorder %s117, %s120
      %p126 = scmp.eq.s32.totalorder %s21, 0
      %p127 = por %p125, %p126
      %p128 = scmp.ne.s32.totalorder %s117, %s120
      %p129 = scmp.eq.s32.totalorder %s26, 5
      %p130 = por %p128, %p129
      %p131 = scmp.ne.s32.totalorder %s120, %s121
      %p132 = scmp.eq.s32.totalorder %s26, 0
      %p133 = por %p131, %p132
      %p134 = scmp.ne.s32.totalorder %s120, %s121
      %p135 = scmp.eq.s32.totalorder %s27, 5
      %p136 = por %p134, %p135
      %p138 = scmp.ne.s32.totalorder %s121, %s137
      %p139 = scmp.eq.s32.totalorder %s27, 0
      %p140 = por %p138, %p139
      %s142 = sadd.s32 %s141, 1
      %p145 = scmp.eq.s32.totalorder %s21, 5
      %p146 = scmp.ne.s32.totalorder %s141, %s143
      %p147 = scmp.eq.s32.totalorder %s21, 0
      %p148 = por %p146, %p147
      %p149 = scmp.ne.s32.totalorder %s141, %s143
      %p150 = scmp.eq.s32.totalorder %s26, 5
      %p151 = por %p149, %p150
      %p152 = scmp.ne.s32.totalorder %s143, %s144
      %p153 = scmp.eq.s32.totalorder %s26, 0
      %p154 = por %p152, %p153
      %p155 = scmp.ne.s32.totalorder %s143, %s144
      %p156 = scmp.eq.s32.totalorder %s27, 5
      %p157 = por %p155, %p156
      %p159 = scmp.ne.s32.totalorder %s144, %s158
      %p160 = scmp.eq.s32.totalorder %s27, 0
      %p161 = por %p159, %p160
      %s163 = sadd.s32 %s162, 1
      %p166 = scmp.eq.s32.totalorder %s21, 5
      %p167 = scmp.ne.s32.totalorder %s162, %s164
      %p168 = scmp.eq.s32.totalorder %s21, 0
      %p169 = por %p167, %p168
      %p170 = scmp.ne.s32.totalorder %s162, %s164
      %p171 = scmp.eq.s32.totalorder %s26, 5
      %p172 = por %p170, %p171
      %p173 = scmp.ne.s32.totalorder %s164, %s165
      %p174 = scmp.eq.s32.totalorder %s26, 0
      %p175 = por %p173, %p174
      %p176 = scmp.ne.s32.totalorder %s164, %s165
      %p177 = scmp.eq.s32.totalorder %s27, 5
      %p178 = por %p176, %p177
      %p180 = scmp.ne.s32.totalorder %s165, %s179
      %p181 = scmp.eq.s32.totalorder %s27, 0
      %p182 = por %p180, %p181
      %s183 = ssub.s32 %s28, %s40
      %s184 = ssub.s32 %s29, %s36
      %s185 = sor.u32 %s183, %s184
      %p186 = scmp.eq.s32.totalorder %s185, 0
      %s188 = sadd.s32 %s187, 1
      %s189 = scalar_select %p186, %s187, %s188
      %p192 = pneg %p186
      %p193 = scmp.eq.s32.totalorder %s21, 5
      %p194 = por %p192, %p193
      %p195 = scmp.ne.s32.totalorder %s187, %s190
      %p196 = scmp.eq.s32.totalorder %s21, 0
      %p197 = por %p195, %p196
      %p198 = scmp.ne.s32.totalorder %s187, %s190
      %p199 = scmp.eq.s32.totalorder %s26, 5
      %p200 = por %p198, %p199
      %p201 = scmp.ne.s32.totalorder %s190, %s191
      %p202 = scmp.eq.s32.totalorder %s26, 0
      %p203 = por %p201, %p202
      %p204 = scmp.ne.s32.totalorder %s190, %s191
      %p205 = scmp.eq.s32.totalorder %s27, 5
      %p206 = por %p204, %p205
      %p208 = scmp.ne.s32.totalorder %s191, %s207
      %p209 = scmp.eq.s32.totalorder %s27, 0
      %p210 = por %p208, %p209
      %p211 = scmp.le.s32.totalorder 1, %s21
      %p212 = scmp.lt.s32.totalorder %s21, 7
      %p213 = pnand %p211, %p212
      %p214 = pneg %p213
      // Predicated region
      $region9: #{res_conv1d_nlc.1} parent=5 // pred_check
        _
      $region10: #{res_conv1d_nlc.1} parent=5 // pred_check_branch
        %216 = sbr.rel (%p213) target = $region12
      $region11: #{res_conv1d_nlc.1} parent=5 // pred_region
        %s217 = ssub.s32 %s21, 1
        // Predicated region
        $region13: #{res_conv1d_nlc.1} parent=11 // pred_check
          %p218 = pneg %p154
        $region14: #{res_conv1d_nlc.1} parent=11 // pred_check_branch
          %220 = sbr.rel (%p218) target = $region16
        $region15: #{res_conv1d_nlc.1} parent=11 // pred_region
          %s222 = ssub.s32 5120, 5120
          %223 = vsyncadd [#allocation10], %s222
          %s224 = sshll.u32 [#allocation9], 4
          %s225 = int_to_ptr.vmem [resolvable:$true] %s224
          %230 = dma.hbm_to_vmem [thread:$0]  %s3, 5120, %s225, [#allocation10], 64, 64, 4
        $region16: #{res_conv1d_nlc.1} parent=11 // pred_fallthru
          _
        // Predicated region
        $region17: #{res_conv1d_nlc.1} parent=11 // pred_check
          %p231 = pneg %p175
        $region18: #{res_conv1d_nlc.1} parent=11 // pred_check_branch
          %233 = sbr.rel (%p231) target = $region20
        $region19: #{res_conv1d_nlc.1} parent=11 // pred_region
          _
        $region20: #{res_conv1d_nlc.1} parent=11 // pred_fallthru
          _
      $region12: #{res_conv1d_nlc.1} parent=5 // pred_fallthru
        _
      %p234 = scmp.lt.s32.totalorder %s21, 6
      // Predicated region
      $region21: #{res_conv1d_nlc.1} parent=5 // pred_check
        %p235 = pneg %p234
      $region22: #{res_conv1d_nlc.1} parent=5 // pred_check_branch
        %237 = sbr.rel (%p235) target = $region24
      $region23: #{res_conv1d_nlc.1} parent=5 // pred_region
        // Predicated region
        $region25: #{res_conv1d_nlc.1} parent=23 // pred_check
          %p238 = pneg %p55
        $region26: #{res_conv1d_nlc.1} parent=23 // pred_check_branch
          %240 = sbr.rel (%p238) target = $region28
        $region27: #{res_conv1d_nlc.1} parent=23 // pred_region
          %s241 = sand.u32 %s45, 1
          %s242 = scalar_lea.sflag [#allocation4], %s241
          %s243 = sand.u32 %s45, 1
          %s244 = smul.addr %s243, 64
          %s245 = scalar_lea.vmem [#allocation3], %s244
          %s246 = smul.u32 16, %s29
          %s248 = ssub.s32 1024, 1024
          %249 = vsyncadd %s242, %s248
          %s250 = smul.addr %s28, 48
          %s251 = sadd.s32 %s246, %s250
          %s252 = smul.addr %s251, 64
          %s253 = scalar_lea.hbm %s0, %s252
          %s254 = sshll.u32 %s245, 4
          %s255 = int_to_ptr.vmem [resolvable:$true] %s254
          %260 = dma.hbm_to_vmem [thread:$0]  %s253, 1024, %s255, %s242, 64, 64, 4
        $region28: #{res_conv1d_nlc.1} parent=23 // pred_fallthru
          _
        // Predicated region
        $region29: #{res_conv1d_nlc.1} parent=23 // pred_check
          %p261 = pneg %p91
        $region30: #{res_conv1d_nlc.1} parent=23 // pred_check_branch
          %263 = sbr.rel (%p261) target = $region32
        $region31: #{res_conv1d_nlc.1} parent=23 // pred_region
          %s264 = sand.u32 %s21, 1
          %s265 = scalar_lea.sflag [#allocation7], %s264
          %s266 = sand.u32 %s81, 1
          %s267 = smul.addr %s266, 8
          %s268 = scalar_lea.vmem [#allocation6], %s267
          %s269 = smul.u32 %s29, 8
          %s270 = ssub.s32 %s269, 1
          %p271 = scmp.gt.s32.totalorder %s270, 0
          %s272 = scalar_select %p271, %s270, 0
          %s273 = smul.u32 2, %s272
          %s275 = ssub.s32 128, 128
          %276 = vsyncadd %s265, %s275
          %s277 = smul.addr %s28, 48
          %s278 = sadd.s32 %s273, %s277
          %s279 = smul.addr %s278, 64
          %s280 = scalar_lea.hbm %s1, %s279
          %s281 = sshll.u32 %s268, 4
          %s282 = int_to_ptr.vmem [resolvable:$true] %s281
          %287 = dma.hbm_to_vmem [thread:$0]  %s280, 128, %s282, %s265, 64, 64, 4
        $region32: #{res_conv1d_nlc.1} parent=23 // pred_fallthru
          _
        // Predicated region
        $region33: #{res_conv1d_nlc.1} parent=23 // pred_check
          %p288 = pneg %p127
        $region34: #{res_conv1d_nlc.1} parent=23 // pred_check_branch
          %290 = sbr.rel (%p288) target = $region36
        $region35: #{res_conv1d_nlc.1} parent=23 // pred_region
          %s291 = sand.u32 %s21, 1
          %s292 = scalar_lea.sflag [#allocation7], %s291
          %s293 = sand.u32 %s117, 1
          %s294 = smul.addr %s293, 8
          %s295 = scalar_lea.vmem [#allocation8], %s294
          %s296 = sadd.s32 %s29, 1
          %s297 = smul.u32 %s296, 8
          %p298 = scmp.lt.s32.totalorder %s297, 23
          %s299 = scalar_select %p298, %s297, 23
          %s300 = smul.u32 2, %s299
          %s302 = ssub.s32 128, 128
          %303 = vsyncadd %s292, %s302
          %s304 = smul.addr %s28, 48
          %s305 = sadd.s32 %s300, %s304
          %s306 = smul.addr %s305, 64
          %s307 = scalar_lea.hbm %s2, %s306
          %s308 = sshll.u32 %s295, 4
          %s309 = int_to_ptr.vmem [resolvable:$true] %s308
          %314 = dma.hbm_to_vmem [thread:$0]  %s307, 128, %s309, %s292, 64, 64, 4
        $region36: #{res_conv1d_nlc.1} parent=23 // pred_fallthru
          _
      $region24: #{res_conv1d_nlc.1} parent=5 // pred_fallthru
        _
      %p315 = scmp.le.s32.totalorder 1, %s21
      %p316 = scmp.lt.s32.totalorder %s21, 7
      %p317 = pnand %p315, %p316
      %p318 = pneg %p317
      // Predicated region
      $region37: #{res_conv1d_nlc.1} parent=5 // pred_check
        _
      $region38: #{res_conv1d_nlc.1} parent=5 // pred_check_branch
        %320 = sbr.rel (%p317) target = $region40
      $region39: #{res_conv1d_nlc.1} parent=5 // pred_region
        %s321 = ssub.s32 %s21, 1
        %s322 = sand.u32 %s48, 1
        %s323 = scalar_lea.sflag [#allocation4], %s322
        %s324 = sand.u32 %s48, 1
        %s325 = smul.addr %s324, 64
        %s326 = scalar_lea.vmem [#allocation3], %s325
        // Predicated region
        $region41: #{res_conv1d_nlc.1} parent=39 // pred_check
          %p327 = pneg %p61
        $region42: #{res_conv1d_nlc.1} parent=39 // pred_check_branch
          %329 = sbr.rel (%p327) target = $region44
        $region43: #{res_conv1d_nlc.1} parent=39 // pred_region
          %330 = dma.done %s323, 1024
        $region44: #{res_conv1d_nlc.1} parent=39 // pred_fallthru
          _
        %s331 = sand.u32 %s26, 1
        %s332 = scalar_lea.sflag [#allocation7], %s331
        %s333 = sand.u32 %s84, 1
        %s334 = smul.addr %s333, 8
        %s335 = scalar_lea.vmem [#allocation6], %s334
        // Predicated region
        $region45: #{res_conv1d_nlc.1} parent=39 // pred_check
          %p336 = pneg %p97
        $region46: #{res_conv1d_nlc.1} parent=39 // pred_check_branch
          %338 = sbr.rel (%p336) target = $region48
        $region47: #{res_conv1d_nlc.1} parent=39 // pred_region
          %339 = dma.done %s332, 128
        $region48: #{res_conv1d_nlc.1} parent=39 // pred_fallthru
          _
        %s340 = sand.u32 %s26, 1
        %s341 = scalar_lea.sflag [#allocation7], %s340
        %s342 = sand.u32 %s120, 1
        %s343 = smul.addr %s342, 8
        %s344 = scalar_lea.vmem [#allocation8], %s343
        // Predicated region
        $region49: #{res_conv1d_nlc.1} parent=39 // pred_check
          %p345 = pneg %p133
        $region50: #{res_conv1d_nlc.1} parent=39 // pred_check_branch
          %347 = sbr.rel (%p345) target = $region52
        $region51: #{res_conv1d_nlc.1} parent=39 // pred_region
          %348 = dma.done %s341, 128
        $region52: #{res_conv1d_nlc.1} parent=39 // pred_fallthru
          _
        // Predicated region
        $region53: #{res_conv1d_nlc.1} parent=39 // pred_check
          %p349 = pneg %p154
        $region54: #{res_conv1d_nlc.1} parent=39 // pred_check_branch
          %351 = sbr.rel (%p349) target = $region56
        $region55: #{res_conv1d_nlc.1} parent=39 // pred_region
          %352 = dma.done [#allocation10], 5120
        $region56: #{res_conv1d_nlc.1} parent=39 // pred_fallthru
          _
        %s353 = sand.u32 %s48, 1
        %s354 = scalar_lea.sflag [#allocation4], %s353
        %s355 = sand.u32 %s48, 1
        %s356 = smul.addr %s355, 64
        %s357 = scalar_lea.vmem [#allocation3], %s356
        %p358 = pneg %p61
        %p359 = pneg %p58
        %s360 = sand.u32 %s26, 1
        %s361 = scalar_lea.sflag [#allocation7], %s360
        %s362 = sand.u32 %s84, 1
        %s363 = smul.addr %s362, 8
        %s364 = scalar_lea.vmem [#allocation6], %s363
        %p365 = pneg %p97
        %p366 = pneg %p94
        %s367 = sand.u32 %s26, 1
        %s368 = scalar_lea.sflag [#allocation7], %s367
        %s369 = sand.u32 %s120, 1
        %s370 = smul.addr %s369, 8
        %s371 = scalar_lea.vmem [#allocation8], %s370
        %p372 = pneg %p133
        %p373 = pneg %p130
        %p374 = pneg %p154
        %p375 = pneg %p151
        %p376 = pneg %p175
        %p377 = pneg %p172
        %p378 = pneg %p203
        %p379 = pneg %p200
        %s380 = sand.u32 %s190, 1
        %s381 = scalar_lea.sflag [#allocation5], %s380
        %s382 = sand.u32 %s190, 1
        %s383 = smul.addr %s382, 64
        %s384 = scalar_lea.vmem [#allocation11], %s383
        %s385 = smul.u32 16, %s31
        %s386 = smul.u32 %s31, 8
        %s387 = ssub.s32 %s386, 1
        %p388 = scmp.gt.s32.totalorder %s387, 0
        %s389 = scalar_select %p388, %s387, 0
        %s390 = smul.u32 2, %s389
        %s391 = sadd.s32 %s31, 1
        %s392 = smul.u32 %s391, 8
        %p393 = scmp.lt.s32.totalorder %s392, 23
        %s394 = scalar_select %p393, %s392, 23
        %s395 = smul.u32 2, %s394
        %s396 = smul.u32 16, %s31
        %v398 = vld [vmem:[%s326] sm:$0xf]
        %v399 = vld [vmem:[%s326 + $0x4] sm:$0xf]
        %v400 = vld [vmem:[%s326 + $0x8] sm:$0xf]
        %v401 = vld [vmem:[%s326 + $0xc] sm:$0xf]
        %v402 = vld [vmem:[%s326 + $0x10] sm:$0xf]
        %v403 = vld [vmem:[%s326 + $0x14] sm:$0xf]
        %v404 = vld [vmem:[%s326 + $0x18] sm:$0xf]
        %v405 = vld [vmem:[%s326 + $0x1c] sm:$0xf]
        %v406 = vld [vmem:[%s326 + $0x20] sm:$0xf]
        %v407 = vld [vmem:[%s326 + $0x24] sm:$0xf]
        %v408 = vld [vmem:[%s326 + $0x28] sm:$0xf]
        %v409 = vld [vmem:[%s326 + $0x2c] sm:$0xf]
        %v410 = vld [vmem:[%s326 + $0x30] sm:$0xf]
        %v411 = vld [vmem:[%s326 + $0x34] sm:$0xf]
        %v412 = vld [vmem:[%s326 + $0x38] sm:$0xf]
        %v413 = vld [vmem:[%s326 + $0x3c] sm:$0xf]
        %s414 = scalar_lea.vmem [#allocation9], 128
        %v415 = vld [vmem:[%s414] sm:$0xf]
        %v416 = vld [vmem:[%s414 + $0x4] sm:$0xf]
        %v417 = vld [vmem:[%s414 + $0x8] sm:$0xf]
        %v418 = vld [vmem:[%s414 + $0xc] sm:$0xf]
        %v419 = vld [vmem:[%s414 + $0x10] sm:$0xf]
        %v420 = vld [vmem:[%s414 + $0x14] sm:$0xf]
        %v421 = vld [vmem:[%s414 + $0x18] sm:$0xf]
        %v422 = vld [vmem:[%s414 + $0x1c] sm:$0xf]
        %v423 = vld [vmem:[%s414 + $0x20] sm:$0xf]
        %v424 = vld [vmem:[%s414 + $0x24] sm:$0xf]
        %v425 = vld [vmem:[%s414 + $0x28] sm:$0xf]
        %v426 = vld [vmem:[%s414 + $0x2c] sm:$0xf]
        %v427 = vld [vmem:[%s414 + $0x30] sm:$0xf]
        %v428 = vld [vmem:[%s414 + $0x34] sm:$0xf]
        %v429 = vld [vmem:[%s414 + $0x38] sm:$0xf]
        %v430 = vld [vmem:[%s414 + $0x3c] sm:$0xf]
        %v431 = vld [vmem:[%s4] sm:$0x1]
        %v433 = vlaneseq
        %v434 = vshrl.u32 %v433, 7
        %v435 = vsub.s32 0, %v434
        %v436 = vrot.slane %v431, %v435
        %v454 = vunpack.c.l.b16 %v398
        %v455 = vunpack.c.l.b16 %v399
        %v456 = vunpack.c.l.b16 %v400
        %v457 = vunpack.c.l.b16 %v401
        %v458 = vunpack.c.l.b16 %v402
        %v459 = vunpack.c.l.b16 %v403
        %v460 = vunpack.c.l.b16 %v404
        %v461 = vunpack.c.l.b16 %v405
        %v462 = vunpack.c.l.b16 %v406
        %v463 = vunpack.c.l.b16 %v407
        %v464 = vunpack.c.l.b16 %v408
        %v465 = vunpack.c.l.b16 %v409
        %v466 = vunpack.c.l.b16 %v410
        %v467 = vunpack.c.l.b16 %v411
        %v468 = vunpack.c.l.b16 %v412
        %v469 = vunpack.c.l.b16 %v413
        %v470 = vpack.c.b16 %v455, %v454
        %v471 = vpack.c.b16 %v457, %v456
        %v472 = vpack.c.b16 %v459, %v458
        %v473 = vpack.c.b16 %v461, %v460
        %v474 = vpack.c.b16 %v463, %v462
        %v475 = vpack.c.b16 %v465, %v464
        %v476 = vpack.c.b16 %v467, %v466
        %v477 = vpack.c.b16 %v469, %v468
        %v502 = vunpack.c.l.b16 %v415
        %v503 = vunpack.c.l.b16 %v416
        %v504 = vunpack.c.l.b16 %v417
        %v505 = vunpack.c.l.b16 %v418
        %v506 = vunpack.c.l.b16 %v419
        %v507 = vunpack.c.l.b16 %v420
        %v508 = vunpack.c.l.b16 %v421
        %v509 = vunpack.c.l.b16 %v422
        %v510 = vunpack.c.l.b16 %v423
        %v511 = vunpack.c.l.b16 %v424
        %v512 = vunpack.c.l.b16 %v425
        %v513 = vunpack.c.l.b16 %v426
        %v514 = vunpack.c.l.b16 %v427
        %v515 = vunpack.c.l.b16 %v428
        %v516 = vunpack.c.l.b16 %v429
        %v517 = vunpack.c.l.b16 %v430
        %v518 = vpack.c.b16 %v503, %v502
        %v519 = vpack.c.b16 %v505, %v504
        %v520 = vpack.c.b16 %v507, %v506
        %v521 = vpack.c.b16 %v509, %v508
        %v522 = vpack.c.b16 %v511, %v510
        %v523 = vpack.c.b16 %v513, %v512
        %v524 = vpack.c.b16 %v515, %v514
        %v525 = vpack.c.b16 %v517, %v516
        %534 = vmatprep.subr.bf16.mxu0 0
        %535 = vmatpush1.bf16.msra.mxu0 %v518
        %536 = vmatprep.subr.bf16.mxu0 0
        %537 = vmatpush1.bf16.msra.mxu0 %v519
        %538 = vmatprep.subr.bf16.mxu0 0
        %539 = vmatpush1.bf16.msra.mxu0 %v520
        %540 = vmatprep.subr.bf16.mxu0 0
        %541 = vmatpush1.bf16.msra.mxu0 %v521
        %542 = vmatprep.subr.bf16.mxu0 0
        %543 = vmatpush1.bf16.msra.mxu0 %v522
        %544 = vmatprep.subr.bf16.mxu0 0
        %545 = vmatpush1.bf16.msra.mxu0 %v523
        %546 = vmatprep.subr.bf16.mxu0 0
        %547 = vmatpush1.bf16.msra.mxu0 %v524
        %548 = vmatprep.subr.bf16.mxu0 0
        %549 = vmatpush1.bf16.msra.mxu0 %v525
        %550 = vmatprep.subr.bf16.mxu0 0
        %551 = vmatpush1.bf16.msra.mxu0 0
        %552 = vmatprep.subr.bf16.mxu0 0
        %553 = vmatpush1.bf16.msra.mxu0 0
        %554 = vmatprep.subr.bf16.mxu0 0
        %555 = vmatpush1.bf16.msra.mxu0 0
        %556 = vmatprep.subr.bf16.mxu0 0
        %557 = vmatpush1.bf16.msra.mxu0 0
        %558 = vmatprep.subr.bf16.mxu0 0
        %559 = vmatpush1.bf16.msra.mxu0 0
        %560 = vmatprep.subr.bf16.mxu0 0
        %561 = vmatpush1.bf16.msra.mxu0 0
        %562 = vmatprep.subr.bf16.mxu0 0
        %563 = vmatpush1.bf16.msra.mxu0 0
        %564 = vmatprep.subr.bf16.mxu0 0
        %565 = vmatpush1.bf16.msra.mxu0 0
        %566 = vmatprep.mubr.bf16.mxu0 0
        %567 = vmatmul.mubr.bf16.gmra.mrb[0].mxu0 %v470
        %v568 = vpop.f32.mrb[0].mxu0
        %v569 = vadd.f32 %v436, %v568
        %v570 = vpop.f32.mrb[0].mxu0
        %v571 = vpop.f32.mrb[0].mxu0
        %v572 = vadd.f32 %v436, %v571
        %v573 = vpop.f32.mrb[0].mxu0
        %574 = vmatprep.mubr.bf16.mxu0 0
        %575 = vmatmul.mubr.bf16.gmra.mrb[0].mxu0 %v471
        %v576 = vpop.f32.mrb[0].mxu0
        %v577 = vadd.f32 %v436, %v576
        %v578 = vpop.f32.mrb[0].mxu0
        %v579 = vpop.f32.mrb[0].mxu0
        %v580 = vadd.f32 %v436, %v579
        %v581 = vpop.f32.mrb[0].mxu0
        %582 = vmatprep.mubr.bf16.mxu0 0
        %583 = vmatmul.mubr.bf16.gmra.mrb[0].mxu0 %v472
        %v584 = vpop.f32.mrb[0].mxu0
        %v585 = vadd.f32 %v436, %v584
        %v586 = vpop.f32.mrb[0].mxu0
        %v587 = vpop.f32.mrb[0].mxu0
        %v588 = vadd.f32 %v436, %v587
        %v589 = vpop.f32.mrb[0].mxu0
        %590 = vmatprep.mubr.bf16.mxu0 0
        %591 = vmatmul.mubr.bf16.gmra.mrb[0].mxu0 %v473
        %v592 = vpop.f32.mrb[0].mxu0
        %v593 = vadd.f32 %v436, %v592
        %v594 = vpop.f32.mrb[0].mxu0
        %v595 = vpop.f32.mrb[0].mxu0
        %v596 = vadd.f32 %v436, %v595
        %v597 = vpop.f32.mrb[0].mxu0
        %598 = vmatprep.mubr.bf16.mxu0 0
        %599 = vmatmul.mubr.bf16.gmra.mrb[0].mxu0 %v474
        %v600 = vpop.f32.mrb[0].mxu0
        %v601 = vadd.f32 %v436, %v600
        %v602 = vpop.f32.mrb[0].mxu0
        %v603 = vpop.f32.mrb[0].mxu0
        %v604 = vadd.f32 %v436, %v603
        %v605 = vpop.f32.mrb[0].mxu0
        %606 = vmatprep.mubr.bf16.mxu0 0
        %607 = vmatmul.mubr.bf16.gmra.mrb[0].mxu0 %v475
        %v608 = vpop.f32.mrb[0].mxu0
        %v609 = vadd.f32 %v436, %v608
        %v610 = vpop.f32.mrb[0].mxu0
        %v611 = vpop.f32.mrb[0].mxu0
        %v612 = vadd.f32 %v436, %v611
        %v613 = vpop.f32.mrb[0].mxu0
        %614 = vmatprep.mubr.bf16.mxu0 0
        %615 = vmatmul.mubr.bf16.gmra.mrb[0].mxu0 %v476
        %v616 = vpop.f32.mrb[0].mxu0
        %v617 = vadd.f32 %v436, %v616
        %v618 = vpop.f32.mrb[0].mxu0
        %v619 = vpop.f32.mrb[0].mxu0
        %v620 = vadd.f32 %v436, %v619
        %v621 = vpop.f32.mrb[0].mxu0
        %622 = vmatprep.mubr.bf16.mxu0 0
        %623 = vmatmul.mubr.bf16.gmra.mrb[0].mxu0 %v477
        %v624 = vpop.f32.mrb[0].mxu0
        %v625 = vadd.f32 %v436, %v624
        %v626 = vpop.f32.mrb[0].mxu0
        %v627 = vpop.f32.mrb[0].mxu0
        %v628 = vadd.f32 %v436, %v627
        %v629 = vpop.f32.mrb[0].mxu0
        %630 = vdwg.mxu0
        %631 = vst [vmem:[#allocation2] sm:$0xff] %v569
        %632 = vst [vmem:[#allocation2 + $0x8] sm:$0xff] %v572
        %633 = vst [vmem:[#allocation2 + $0x10] sm:$0xff] %v577
        %634 = vst [vmem:[#allocation2 + $0x18] sm:$0xff] %v580
        %635 = vst [vmem:[#allocation2 + $0x20] sm:$0xff] %v585
        %636 = vst [vmem:[#allocation2 + $0x28] sm:$0xff] %v588
        %637 = vst [vmem:[#allocation2 + $0x30] sm:$0xff] %v593
        %638 = vst [vmem:[#allocation2 + $0x38] sm:$0xff] %v596
        %639 = vst [vmem:[#allocation2 + $0x40] sm:$0xff] %v601
        %640 = vst [vmem:[#allocation2 + $0x48] sm:$0xff] %v604
        %641 = vst [vmem:[#allocation2 + $0x50] sm:$0xff] %v609
        %642 = vst [vmem:[#allocation2 + $0x58] sm:$0xff] %v612
        %643 = vst [vmem:[#allocation2 + $0x60] sm:$0xff] %v617
        %644 = vst [vmem:[#allocation2 + $0x68] sm:$0xff] %v620
        %645 = vst [vmem:[#allocation2 + $0x70] sm:$0xff] %v625
        %646 = vst [vmem:[#allocation2 + $0x78] sm:$0xff] %v628
        %v647 = vld [vmem:[#allocation9] sm:$0xf]
        %v648 = vld [vmem:[#allocation9 + $0x4] sm:$0xf]
        %v649 = vld [vmem:[#allocation9 + $0x8] sm:$0xf]
        %v650 = vld [vmem:[#allocation9 + $0xc] sm:$0xf]
        %v651 = vld [vmem:[#allocation9 + $0x10] sm:$0xf]
        %v652 = vld [vmem:[#allocation9 + $0x14] sm:$0xf]
        %v653 = vld [vmem:[#allocation9 + $0x18] sm:$0xf]
        %v654 = vld [vmem:[#allocation9 + $0x1c] sm:$0xf]
        %v655 = vld [vmem:[#allocation9 + $0x20] sm:$0xf]
        %v656 = vld [vmem:[#allocation9 + $0x24] sm:$0xf]
        %v657 = vld [vmem:[#allocation9 + $0x28] sm:$0xf]
        %v658 = vld [vmem:[#allocation9 + $0x2c] sm:$0xf]
        %v659 = vld [vmem:[#allocation9 + $0x30] sm:$0xf]
        %v660 = vld [vmem:[#allocation9 + $0x34] sm:$0xf]
        %v661 = vld [vmem:[#allocation9 + $0x38] sm:$0xf]
        %v662 = vld [vmem:[#allocation9 + $0x3c] sm:$0xf]
        %v679 = vunpack.c.l.b16 %v647
        %v680 = vunpack.c.l.b16 %v648
        %v681 = vunpack.c.l.b16 %v649
        %v682 = vunpack.c.l.b16 %v650
        %v683 = vunpack.c.l.b16 %v651
        %v684 = vunpack.c.l.b16 %v652
        %v685 = vunpack.c.l.b16 %v653
        %v686 = vunpack.c.l.b16 %v654
        %v687 = vunpack.c.l.b16 %v655
        %v688 = vunpack.c.l.b16 %v656
        %v689 = vunpack.c.l.b16 %v657
        %v690 = vunpack.c.l.b16 %v658
        %v691 = vunpack.c.l.b16 %v659
        %v692 = vunpack.c.l.b16 %v660
        %v693 = vunpack.c.l.b16 %v661
        %v694 = vunpack.c.l.b16 %v662
        %v695 = vpack.c.b16 %v680, %v679
        %v696 = vpack.c.b16 %v682, %v681
        %v697 = vpack.c.b16 %v684, %v683
        %v698 = vpack.c.b16 %v686, %v685
        %v699 = vpack.c.b16 %v688, %v687
        %v700 = vpack.c.b16 %v690, %v689
        %v701 = vpack.c.b16 %v692, %v691
        %v702 = vpack.c.b16 %v694, %v693
        %711 = vmatprep.subr.bf16.mxu0 0
        %712 = vmatpush1.bf16.msra.mxu0 %v695
        %713 = vmatprep.subr.bf16.mxu0 0
        %714 = vmatpush1.bf16.msra.mxu0 %v696
        %715 = vmatprep.subr.bf16.mxu0 0
        %716 = vmatpush1.bf16.msra.mxu0 %v697
        %717 = vmatprep.subr.bf16.mxu0 0
        %718 = vmatpush1.bf16.msra.mxu0 %v698
        %719 = vmatprep.subr.bf16.mxu0 0
        %720 = vmatpush1.bf16.msra.mxu0 %v699
        %721 = vmatprep.subr.bf16.mxu0 0
        %722 = vmatpush1.bf16.msra.mxu0 %v700
        %723 = vmatprep.subr.bf16.mxu0 0
        %724 = vmatpush1.bf16.msra.mxu0 %v701
        %725 = vmatprep.subr.bf16.mxu0 0
        %726 = vmatpush1.bf16.msra.mxu0 %v702
        %727 = vmatprep.subr.bf16.mxu0 0
        %728 = vmatpush1.bf16.msra.mxu0 0
        %729 = vmatprep.subr.bf16.mxu0 0
        %730 = vmatpush1.bf16.msra.mxu0 0
        %731 = vmatprep.subr.bf16.mxu0 0
        %732 = vmatpush1.bf16.msra.mxu0 0
        %733 = vmatprep.subr.bf16.mxu0 0
        %734 = vmatpush1.bf16.msra.mxu0 0
        %735 = vmatprep.subr.bf16.mxu0 0
        %736 = vmatpush1.bf16.msra.mxu0 0
        %737 = vmatprep.subr.bf16.mxu0 0
        %738 = vmatpush1.bf16.msra.mxu0 0
        %739 = vmatprep.subr.bf16.mxu0 0
        %740 = vmatpush1.bf16.msra.mxu0 0
        %741 = vmatprep.subr.bf16.mxu0 0
        %742 = vmatpush1.bf16.msra.mxu0 0
        %743 = vmatprep.mubr.bf16.mxu0 0
        %744 = vmatmul.mubr.bf16.gmra.mrb[0].mxu0 %v470
        %v745 = vpop.f32.mrb[0].mxu0
        %v746 = vadd.f32 0.0, %v745
        %v747 = vpop.f32.mrb[0].mxu0
        %v748 = vpop.f32.mrb[0].mxu0
        %v749 = vadd.f32 0.0, %v748
        %v750 = vpop.f32.mrb[0].mxu0
        %751 = vmatprep.mubr.bf16.mxu0 0
        %752 = vmatmul.mubr.bf16.gmra.mrb[0].mxu0 %v471
        %v753 = vpop.f32.mrb[0].mxu0
        %v754 = vadd.f32 0.0, %v753
        %v755 = vpop.f32.mrb[0].mxu0
        %v756 = vpop.f32.mrb[0].mxu0
        %v757 = vadd.f32 0.0, %v756
        %v758 = vpop.f32.mrb[0].mxu0
        %759 = vmatprep.mubr.bf16.mxu0 0
        %760 = vmatmul.mubr.bf16.gmra.mrb[0].mxu0 %v472
        %v761 = vpop.f32.mrb[0].mxu0
        %v762 = vadd.f32 0.0, %v761
        %v763 = vpop.f32.mrb[0].mxu0
        %v764 = vpop.f32.mrb[0].mxu0
        %v765 = vadd.f32 0.0, %v764
        %v766 = vpop.f32.mrb[0].mxu0
        %767 = vmatprep.mubr.bf16.mxu0 0
        %768 = vmatmul.mubr.bf16.gmra.mrb[0].mxu0 %v473
        %v769 = vpop.f32.mrb[0].mxu0
        %v770 = vadd.f32 0.0, %v769
        %v771 = vpop.f32.mrb[0].mxu0
        %v772 = vpop.f32.mrb[0].mxu0
        %v773 = vadd.f32 0.0, %v772
        %v774 = vpop.f32.mrb[0].mxu0
        %775 = vmatprep.mubr.bf16.mxu0 0
        %776 = vmatmul.mubr.bf16.gmra.mrb[0].mxu0 %v474
        %v777 = vpop.f32.mrb[0].mxu0
        %v778 = vadd.f32 0.0, %v777
        %v779 = vpop.f32.mrb[0].mxu0
        %v780 = vpop.f32.mrb[0].mxu0
        %v781 = vadd.f32 0.0, %v780
        %v782 = vpop.f32.mrb[0].mxu0
        %783 = vmatprep.mubr.bf16.mxu0 0
        %784 = vmatmul.mubr.bf16.gmra.mrb[0].mxu0 %v475
        %v785 = vpop.f32.mrb[0].mxu0
        %v786 = vadd.f32 0.0, %v785
        %v787 = vpop.f32.mrb[0].mxu0
        %v788 = vpop.f32.mrb[0].mxu0
        %v789 = vadd.f32 0.0, %v788
        %v790 = vpop.f32.mrb[0].mxu0
        %791 = vmatprep.mubr.bf16.mxu0 0
        %792 = vmatmul.mubr.bf16.gmra.mrb[0].mxu0 %v476
        %v793 = vpop.f32.mrb[0].mxu0
        %v794 = vadd.f32 0.0, %v793
        %v795 = vpop.f32.mrb[0].mxu0
        %v796 = vpop.f32.mrb[0].mxu0
        %v797 = vadd.f32 0.0, %v796
        %v798 = vpop.f32.mrb[0].mxu0
        %799 = vmatprep.mubr.bf16.mxu0 0
        %800 = vmatmul.mubr.bf16.gmra.mrb[0].mxu0 %v477
        %v801 = vpop.f32.mrb[0].mxu0
        %v802 = vadd.f32 0.0, %v801
        %v803 = vpop.f32.mrb[0].mxu0
        %v804 = vpop.f32.mrb[0].mxu0
        %v805 = vadd.f32 0.0, %v804
        %v806 = vpop.f32.mrb[0].mxu0
        %807 = vdwg.mxu0
        %v808 = vld [vmem:[#allocation2 + $0x2] sm:$0xff]
        %v809 = vld [vmem:[#allocation2 + $0xa] sm:$0xff]
        %v810 = vld [vmem:[#allocation2 + $0x12] sm:$0xff]
        %v811 = vld [vmem:[#allocation2 + $0x1a] sm:$0xff]
        %v812 = vld [vmem:[#allocation2 + $0x22] sm:$0xff]
        %v813 = vld [vmem:[#allocation2 + $0x2a] sm:$0xff]
        %v814 = vld [vmem:[#allocation2 + $0x32] sm:$0xff]
        %v815 = vld [vmem:[#allocation2 + $0x3a] sm:$0xff]
        %v816 = vld [vmem:[#allocation2 + $0x42] sm:$0xff]
        %v817 = vld [vmem:[#allocation2 + $0x4a] sm:$0xff]
        %v818 = vld [vmem:[#allocation2 + $0x52] sm:$0xff]
        %v819 = vld [vmem:[#allocation2 + $0x5a] sm:$0xff]
        %v820 = vld [vmem:[#allocation2 + $0x62] sm:$0xff]
        %v821 = vld [vmem:[#allocation2 + $0x6a] sm:$0xff]
        %v822 = vld [vmem:[#allocation2 + $0x72] sm:$0xff]
        %v823 = vld [vmem:[#allocation2 + $0x7a] sm:$0x3f]
        %v824 = vadd.f32 %v808, %v746
        %v825 = vadd.f32 %v809, %v749
        %v826 = vadd.f32 %v810, %v754
        %v827 = vadd.f32 %v811, %v757
        %v828 = vadd.f32 %v812, %v762
        %v829 = vadd.f32 %v813, %v765
        %v830 = vadd.f32 %v814, %v770
        %v831 = vadd.f32 %v815, %v773
        %v832 = vadd.f32 %v816, %v778
        %v833 = vadd.f32 %v817, %v781
        %v834 = vadd.f32 %v818, %v786
        %v835 = vadd.f32 %v819, %v789
        %v836 = vadd.f32 %v820, %v794
        %v837 = vadd.f32 %v821, %v797
        %v838 = vadd.f32 %v822, %v802
        %v839 = vadd.f32 %v823, %v805
        %840 = vst [vmem:[#allocation2 + $0x2] sm:$0xff] %v824
        %841 = vst [vmem:[#allocation2 + $0xa] sm:$0xff] %v825
        %842 = vst [vmem:[#allocation2 + $0x12] sm:$0xff] %v826
        %843 = vst [vmem:[#allocation2 + $0x1a] sm:$0xff] %v827
        %844 = vst [vmem:[#allocation2 + $0x22] sm:$0xff] %v828
        %845 = vst [vmem:[#allocation2 + $0x2a] sm:$0xff] %v829
        %846 = vst [vmem:[#allocation2 + $0x32] sm:$0xff] %v830
        %847 = vst [vmem:[#allocation2 + $0x3a] sm:$0xff] %v831
        %848 = vst [vmem:[#allocation2 + $0x42] sm:$0xff] %v832
        %849 = vst [vmem:[#allocation2 + $0x4a] sm:$0xff] %v833
        %850 = vst [vmem:[#allocation2 + $0x52] sm:$0xff] %v834
        %851 = vst [vmem:[#allocation2 + $0x5a] sm:$0xff] %v835
        %852 = vst [vmem:[#allocation2 + $0x62] sm:$0xff] %v836
        %853 = vst [vmem:[#allocation2 + $0x6a] sm:$0xff] %v837
        %854 = vst [vmem:[#allocation2 + $0x72] sm:$0xff] %v838
        %855 = vst [vmem:[#allocation2 + $0x7a] sm:$0x3f] %v839
        %s856 = scalar_lea.vmem [#allocation9], 64
        %v857 = vld [vmem:[%s856] sm:$0xf]
        %v858 = vld [vmem:[%s856 + $0x4] sm:$0xf]
        %v859 = vld [vmem:[%s856 + $0x8] sm:$0xf]
        %v860 = vld [vmem:[%s856 + $0xc] sm:$0xf]
        %v861 = vld [vmem:[%s856 + $0x10] sm:$0xf]
        %v862 = vld [vmem:[%s856 + $0x14] sm:$0xf]
        %v863 = vld [vmem:[%s856 + $0x18] sm:$0xf]
        %v864 = vld [vmem:[%s856 + $0x1c] sm:$0xf]
        %v865 = vld [vmem:[%s856 + $0x20] sm:$0xf]
        %v866 = vld [vmem:[%s856 + $0x24] sm:$0xf]
        %v867 = vld [vmem:[%s856 + $0x28] sm:$0xf]
        %v868 = vld [vmem:[%s856 + $0x2c] sm:$0xf]
        %v869 = vld [vmem:[%s856 + $0x30] sm:$0xf]
        %v870 = vld [vmem:[%s856 + $0x34] sm:$0xf]
        %v871 = vld [vmem:[%s856 + $0x38] sm:$0xf]
        %v872 = vld [vmem:[%s856 + $0x3c] sm:$0xf]
        %v889 = vunpack.c.l.b16 %v857
        %v890 = vunpack.c.l.b16 %v858
        %v891 = vunpack.c.l.b16 %v859
        %v892 = vunpack.c.l.b16 %v860
        %v893 = vunpack.c.l.b16 %v861
        %v894 = vunpack.c.l.b16 %v862
        %v895 = vunpack.c.l.b16 %v863
        %v896 = vunpack.c.l.b16 %v864
        %v897 = vunpack.c.l.b16 %v865
        %v898 = vunpack.c.l.b16 %v866
        %v899 = vunpack.c.l.b16 %v867
        %v900 = vunpack.c.l.b16 %v868
        %v901 = vunpack.c.l.b16 %v869
        %v902 = vunpack.c.l.b16 %v870
        %v903 = vunpack.c.l.b16 %v871
        %v904 = vunpack.c.l.b16 %v872
        %v905 = vpack.c.b16 %v890, %v889
        %v906 = vpack.c.b16 %v892, %v891
        %v907 = vpack.c.b16 %v894, %v893
        %v908 = vpack.c.b16 %v896, %v895
        %v909 = vpack.c.b16 %v898, %v897
        %v910 = vpack.c.b16 %v900, %v899
        %v911 = vpack.c.b16 %v902, %v901
        %v912 = vpack.c.b16 %v904, %v903
        %921 = vmatprep.subr.bf16.mxu0 0
        %922 = vmatpush1.bf16.msra.mxu0 %v905
        %923 = vmatprep.subr.bf16.mxu0 0
        %924 = vmatpush1.bf16.msra.mxu0 %v906
        %925 = vmatprep.subr.bf16.mxu0 0
        %926 = vmatpush1.bf16.msra.mxu0 %v907
        %927 = vmatprep.subr.bf16.mxu0 0
        %928 = vmatpush1.bf16.msra.mxu0 %v908
        %929 = vmatprep.subr.bf16.mxu0 0
        %930 = vmatpush1.bf16.msra.mxu0 %v909
        %931 = vmatprep.subr.bf16.mxu0 0
        %932 = vmatpush1.bf16.msra.mxu0 %v910
        %933 = vmatprep.subr.bf16.mxu0 0
        %934 = vmatpush1.bf16.msra.mxu0 %v911
        %935 = vmatprep.subr.bf16.mxu0 0
        %936 = vmatpush1.bf16.msra.mxu0 %v912
        %937 = vmatprep.subr.bf16.mxu0 0
        %938 = vmatpush1.bf16.msra.mxu0 0
        %939 = vmatprep.subr.bf16.mxu0 0
        %940 = vmatpush1.bf16.msra.mxu0 0
        %941 = vmatprep.subr.bf16.mxu0 0
        %942 = vmatpush1.bf16.msra.mxu0 0
        %943 = vmatprep.subr.bf16.mxu0 0
        %944 = vmatpush1.bf16.msra.mxu0 0
        %945 = vmatprep.subr.bf16.mxu0 0
        %946 = vmatpush1.bf16.msra.mxu0 0
        %947 = vmatprep.subr.bf16.mxu0 0
        %948 = vmatpush1.bf16.msra.mxu0 0
        %949 = vmatprep.subr.bf16.mxu0 0
        %950 = vmatpush1.bf16.msra.mxu0 0
        %951 = vmatprep.subr.bf16.mxu0 0
        %952 = vmatpush1.bf16.msra.mxu0 0
        %953 = vmatprep.mubr.bf16.mxu0 0
        %954 = vmatmul.mubr.bf16.gmra.mrb[0].mxu0 %v470
        %v955 = vpop.f32.mrb[0].mxu0
        %v956 = vadd.f32 0.0, %v955
        %v957 = vpop.f32.mrb[0].mxu0
        %v958 = vpop.f32.mrb[0].mxu0
        %v959 = vadd.f32 0.0, %v958
        %v960 = vpop.f32.mrb[0].mxu0
        %961 = vmatprep.mubr.bf16.mxu0 0
        %962 = vmatmul.mubr.bf16.gmra.mrb[0].mxu0 %v471
        %v963 = vpop.f32.mrb[0].mxu0
        %v964 = vadd.f32 0.0, %v963
        %v965 = vpop.f32.mrb[0].mxu0
        %v966 = vpop.f32.mrb[0].mxu0
        %v967 = vadd.f32 0.0, %v966
        %v968 = vpop.f32.mrb[0].mxu0
        %969 = vmatprep.mubr.bf16.mxu0 0
        %970 = vmatmul.mubr.bf16.gmra.mrb[0].mxu0 %v472
        %v971 = vpop.f32.mrb[0].mxu0
        %v972 = vadd.f32 0.0, %v971
        %v973 = vpop.f32.mrb[0].mxu0
        %v974 = vpop.f32.mrb[0].mxu0
        %v975 = vadd.f32 0.0, %v974
        %v976 = vpop.f32.mrb[0].mxu0
        %977 = vmatprep.mubr.bf16.mxu0 0
        %978 = vmatmul.mubr.bf16.gmra.mrb[0].mxu0 %v473
        %v979 = vpop.f32.mrb[0].mxu0
        %v980 = vadd.f32 0.0, %v979
        %v981 = vpop.f32.mrb[0].mxu0
        %v982 = vpop.f32.mrb[0].mxu0
        %v983 = vadd.f32 0.0, %v982
        %v984 = vpop.f32.mrb[0].mxu0
        %985 = vmatprep.mubr.bf16.mxu0 0
        %986 = vmatmul.mubr.bf16.gmra.mrb[0].mxu0 %v474
        %v987 = vpop.f32.mrb[0].mxu0
        %v988 = vadd.f32 0.0, %v987
        %v989 = vpop.f32.mrb[0].mxu0
        %v990 = vpop.f32.mrb[0].mxu0
        %v991 = vadd.f32 0.0, %v990
        %v992 = vpop.f32.mrb[0].mxu0
        %993 = vmatprep.mubr.bf16.mxu0 0
        %994 = vmatmul.mubr.bf16.gmra.mrb[0].mxu0 %v475
        %v995 = vpop.f32.mrb[0].mxu0
        %v996 = vadd.f32 0.0, %v995
        %v997 = vpop.f32.mrb[0].mxu0
        %v998 = vpop.f32.mrb[0].mxu0
        %v999 = vadd.f32 0.0, %v998
        %v1000 = vpop.f32.mrb[0].mxu0
        %1001 = vmatprep.mubr.bf16.mxu0 0
        %1002 = vmatmul.mubr.bf16.gmra.mrb[0].mxu0 %v476
        %v1003 = vpop.f32.mrb[0].mxu0
        %v1004 = vadd.f32 0.0, %v1003
        %v1005 = vpop.f32.mrb[0].mxu0
        %v1006 = vpop.f32.mrb[0].mxu0
        %v1007 = vadd.f32 0.0, %v1006
        %v1008 = vpop.f32.mrb[0].mxu0
        %1009 = vmatprep.mubr.bf16.mxu0 0
        %1010 = vmatmul.mubr.bf16.gmra.mrb[0].mxu0 %v477
        %v1011 = vpop.f32.mrb[0].mxu0
        %v1012 = vadd.f32 0.0, %v1011
        %v1013 = vpop.f32.mrb[0].mxu0
        %v1014 = vpop.f32.mrb[0].mxu0
        %v1015 = vadd.f32 0.0, %v1014
        %v1016 = vpop.f32.mrb[0].mxu0
        %1017 = vdwg.mxu0
        %v1018 = vld [vmem:[#allocation2 + $0x1] sm:$0xff]
        %v1019 = vld [vmem:[#allocation2 + $0x9] sm:$0xff]
        %v1020 = vld [vmem:[#allocation2 + $0x11] sm:$0xff]
        %v1021 = vld [vmem:[#allocation2 + $0x19] sm:$0xff]
        %v1022 = vld [vmem:[#allocation2 + $0x21] sm:$0xff]
        %v1023 = vld [vmem:[#allocation2 + $0x29] sm:$0xff]
        %v1024 = vld [vmem:[#allocation2 + $0x31] sm:$0xff]
        %v1025 = vld [vmem:[#allocation2 + $0x39] sm:$0xff]
        %v1026 = vld [vmem:[#allocation2 + $0x41] sm:$0xff]
        %v1027 = vld [vmem:[#allocation2 + $0x49] sm:$0xff]
        %v1028 = vld [vmem:[#allocation2 + $0x51] sm:$0xff]
        %v1029 = vld [vmem:[#allocation2 + $0x59] sm:$0xff]
        %v1030 = vld [vmem:[#allocation2 + $0x61] sm:$0xff]
        %v1031 = vld [vmem:[#allocation2 + $0x69] sm:$0xff]
        %v1032 = vld [vmem:[#allocation2 + $0x71] sm:$0xff]
        %v1033 = vld [vmem:[#allocation2 + $0x79] sm:$0x7f]
        %v1034 = vadd.f32 %v1018, %v956
        %v1035 = vadd.f32 %v1019, %v959
        %v1036 = vadd.f32 %v1020, %v964
        %v1037 = vadd.f32 %v1021, %v967
        %v1038 = vadd.f32 %v1022, %v972
        %v1039 = vadd.f32 %v1023, %v975
        %v1040 = vadd.f32 %v1024, %v980
        %v1041 = vadd.f32 %v1025, %v983
        %v1042 = vadd.f32 %v1026, %v988
        %v1043 = vadd.f32 %v1027, %v991
        %v1044 = vadd.f32 %v1028, %v996
        %v1045 = vadd.f32 %v1029, %v999
        %v1046 = vadd.f32 %v1030, %v1004
        %v1047 = vadd.f32 %v1031, %v1007
        %v1048 = vadd.f32 %v1032, %v1012
        %v1049 = vadd.f32 %v1033, %v1015
        %1050 = vst [vmem:[#allocation2 + $0x1] sm:$0xff] %v1034
        %1051 = vst [vmem:[#allocation2 + $0x9] sm:$0xff] %v1035
        %1052 = vst [vmem:[#allocation2 + $0x11] sm:$0xff] %v1036
        %1053 = vst [vmem:[#allocation2 + $0x19] sm:$0xff] %v1037
        %1054 = vst [vmem:[#allocation2 + $0x21] sm:$0xff] %v1038
        %1055 = vst [vmem:[#allocation2 + $0x29] sm:$0xff] %v1039
        %1056 = vst [vmem:[#allocation2 + $0x31] sm:$0xff] %v1040
        %1057 = vst [vmem:[#allocation2 + $0x39] sm:$0xff] %v1041
        %1058 = vst [vmem:[#allocation2 + $0x41] sm:$0xff] %v1042
        %1059 = vst [vmem:[#allocation2 + $0x49] sm:$0xff] %v1043
        %1060 = vst [vmem:[#allocation2 + $0x51] sm:$0xff] %v1044
        %1061 = vst [vmem:[#allocation2 + $0x59] sm:$0xff] %v1045
        %1062 = vst [vmem:[#allocation2 + $0x61] sm:$0xff] %v1046
        %1063 = vst [vmem:[#allocation2 + $0x69] sm:$0xff] %v1047
        %1064 = vst [vmem:[#allocation2 + $0x71] sm:$0xff] %v1048
        %1065 = vst [vmem:[#allocation2 + $0x79] sm:$0x7f] %v1049
        %s1066 = scalar_lea.vmem [#allocation9], 192
        %v1067 = vld [vmem:[%s1066] sm:$0xf]
        %v1068 = vld [vmem:[%s1066 + $0x4] sm:$0xf]
        %v1069 = vld [vmem:[%s1066 + $0x8] sm:$0xf]
        %v1070 = vld [vmem:[%s1066 + $0xc] sm:$0xf]
        %v1071 = vld [vmem:[%s1066 + $0x10] sm:$0xf]
        %v1072 = vld [vmem:[%s1066 + $0x14] sm:$0xf]
        %v1073 = vld [vmem:[%s1066 + $0x18] sm:$0xf]
        %v1074 = vld [vmem:[%s1066 + $0x1c] sm:$0xf]
        %v1075 = vld [vmem:[%s1066 + $0x20] sm:$0xf]
        %v1076 = vld [vmem:[%s1066 + $0x24] sm:$0xf]
        %v1077 = vld [vmem:[%s1066 + $0x28] sm:$0xf]
        %v1078 = vld [vmem:[%s1066 + $0x2c] sm:$0xf]
        %v1079 = vld [vmem:[%s1066 + $0x30] sm:$0xf]
        %v1080 = vld [vmem:[%s1066 + $0x34] sm:$0xf]
        %v1081 = vld [vmem:[%s1066 + $0x38] sm:$0xf]
        %v1082 = vld [vmem:[%s1066 + $0x3c] sm:$0xf]
        %v1099 = vunpack.c.l.b16 %v1067
        %v1100 = vunpack.c.l.b16 %v1068
        %v1101 = vunpack.c.l.b16 %v1069
        %v1102 = vunpack.c.l.b16 %v1070
        %v1103 = vunpack.c.l.b16 %v1071
        %v1104 = vunpack.c.l.b16 %v1072
        %v1105 = vunpack.c.l.b16 %v1073
        %v1106 = vunpack.c.l.b16 %v1074
        %v1107 = vunpack.c.l.b16 %v1075
        %v1108 = vunpack.c.l.b16 %v1076
        %v1109 = vunpack.c.l.b16 %v1077
        %v1110 = vunpack.c.l.b16 %v1078
        %v1111 = vunpack.c.l.b16 %v1079
        %v1112 = vunpack.c.l.b16 %v1080
        %v1113 = vunpack.c.l.b16 %v1081
        %v1114 = vunpack.c.l.b16 %v1082
        %v1115 = vpack.c.b16 %v1100, %v1099
        %v1116 = vpack.c.b16 %v1102, %v1101
        %v1117 = vpack.c.b16 %v1104, %v1103
        %v1118 = vpack.c.b16 %v1106, %v1105
        %v1119 = vpack.c.b16 %v1108, %v1107
        %v1120 = vpack.c.b16 %v1110, %v1109
        %v1121 = vpack.c.b16 %v1112, %v1111
        %v1122 = vpack.c.b16 %v1114, %v1113
        %1131 = vmatprep.subr.bf16.mxu0 0
        %1132 = vmatpush1.bf16.msra.mxu0 %v1115
        %1133 = vmatprep.subr.bf16.mxu0 0
        %1134 = vmatpush1.bf16.msra.mxu0 %v1116
        %1135 = vmatprep.subr.bf16.mxu0 0
        %1136 = vmatpush1.bf16.msra.mxu0 %v1117
        %1137 = vmatprep.subr.bf16.mxu0 0
        %1138 = vmatpush1.bf16.msra.mxu0 %v1118
        %1139 = vmatprep.subr.bf16.mxu0 0
        %1140 = vmatpush1.bf16.msra.mxu0 %v1119
        %1141 = vmatprep.subr.bf16.mxu0 0
        %1142 = vmatpush1.bf16.msra.mxu0 %v1120
        %1143 = vmatprep.subr.bf16.mxu0 0
        %1144 = vmatpush1.bf16.msra.mxu0 %v1121
        %1145 = vmatprep.subr.bf16.mxu0 0
        %1146 = vmatpush1.bf16.msra.mxu0 %v1122
        %1147 = vmatprep.subr.bf16.mxu0 0
        %1148 = vmatpush1.bf16.msra.mxu0 0
        %1149 = vmatprep.subr.bf16.mxu0 0
        %1150 = vmatpush1.bf16.msra.mxu0 0
        %1151 = vmatprep.subr.bf16.mxu0 0
        %1152 = vmatpush1.bf16.msra.mxu0 0
        %1153 = vmatprep.subr.bf16.mxu0 0
        %1154 = vmatpush1.bf16.msra.mxu0 0
        %1155 = vmatprep.subr.bf16.mxu0 0
        %1156 = vmatpush1.bf16.msra.mxu0 0
        %1157 = vmatprep.subr.bf16.mxu0 0
        %1158 = vmatpush1.bf16.msra.mxu0 0
        %1159 = vmatprep.subr.bf16.mxu0 0
        %1160 = vmatpush1.bf16.msra.mxu0 0
        %1161 = vmatprep.subr.bf16.mxu0 0
        %1162 = vmatpush1.bf16.msra.mxu0 0
        %1163 = vmatprep.mubr.bf16.mxu0 0
        %1164 = vmatmul.mubr.bf16.gmra.mrb[0].mxu0 %v470
        %v1165 = vpop.f32.mrb[0].mxu0
        %v1166 = vadd.f32 0.0, %v1165
        %v1167 = vpop.f32.mrb[0].mxu0
        %v1168 = vpop.f32.mrb[0].mxu0
        %v1169 = vadd.f32 0.0, %v1168
        %v1170 = vpop.f32.mrb[0].mxu0
        %1171 = vmatprep.mubr.bf16.mxu0 0
        %1172 = vmatmul.mubr.bf16.gmra.mrb[0].mxu0 %v471
        %v1173 = vpop.f32.mrb[0].mxu0
        %v1174 = vadd.f32 0.0, %v1173
        %v1175 = vpop.f32.mrb[0].mxu0
        %v1176 = vpop.f32.mrb[0].mxu0
        %v1177 = vadd.f32 0.0, %v1176
        %v1178 = vpop.f32.mrb[0].mxu0
        %1179 = vmatprep.mubr.bf16.mxu0 0
        %1180 = vmatmul.mubr.bf16.gmra.mrb[0].mxu0 %v472
        %v1181 = vpop.f32.mrb[0].mxu0
        %v1182 = vadd.f32 0.0, %v1181
        %v1183 = vpop.f32.mrb[0].mxu0
        %v1184 = vpop.f32.mrb[0].mxu0
        %v1185 = vadd.f32 0.0, %v1184
        %v1186 = vpop.f32.mrb[0].mxu0
        %1187 = vmatprep.mubr.bf16.mxu0 0
        %1188 = vmatmul.mubr.bf16.gmra.mrb[0].mxu0 %v473
        %v1189 = vpop.f32.mrb[0].mxu0
        %v1190 = vadd.f32 0.0, %v1189
        %v1191 = vpop.f32.mrb[0].mxu0
        %v1192 = vpop.f32.mrb[0].mxu0
        %v1193 = vadd.f32 0.0, %v1192
        %v1194 = vpop.f32.mrb[0].mxu0
        %1195 = vmatprep.mubr.bf16.mxu0 0
        %1196 = vmatmul.mubr.bf16.gmra.mrb[0].mxu0 %v474
        %v1197 = vpop.f32.mrb[0].mxu0
        %v1198 = vadd.f32 0.0, %v1197
        %v1199 = vpop.f32.mrb[0].mxu0
        %v1200 = vpop.f32.mrb[0].mxu0
        %v1201 = vadd.f32 0.0, %v1200
        %v1202 = vpop.f32.mrb[0].mxu0
        %1203 = vmatprep.mubr.bf16.mxu0 0
        %1204 = vmatmul.mubr.bf16.gmra.mrb[0].mxu0 %v475
        %v1205 = vpop.f32.mrb[0].mxu0
        %v1206 = vadd.f32 0.0, %v1205
        %v1207 = vpop.f32.mrb[0].mxu0
        %v1208 = vpop.f32.mrb[0].mxu0
        %v1209 = vadd.f32 0.0, %v1208
        %v1210 = vpop.f32.mrb[0].mxu0
        %1211 = vmatprep.mubr.bf16.mxu0 0
        %1212 = vmatmul.mubr.bf16.gmra.mrb[0].mxu0 %v476
        %v1213 = vpop.f32.mrb[0].mxu0
        %v1214 = vadd.f32 0.0, %v1213
        %v1215 = vpop.f32.mrb[0].mxu0
        %v1216 = vpop.f32.mrb[0].mxu0
        %v1217 = vadd.f32 0.0, %v1216
        %v1218 = vpop.f32.mrb[0].mxu0
        %1219 = vmatprep.mubr.bf16.mxu0 0
        %1220 = vmatmul.mubr.bf16.gmra.mrb[0].mxu0 %v477
        %v1221 = vpop.f32.mrb[0].mxu0
        %v1222 = vadd.f32 0.0, %v1221
        %v1223 = vpop.f32.mrb[0].mxu0
        %v1224 = vpop.f32.mrb[0].mxu0
        %v1225 = vadd.f32 0.0, %v1224
        %v1226 = vpop.f32.mrb[0].mxu0
        %1227 = vdwg.mxu0
        %v1228 = vld [vmem:[#allocation2] sm:$0xff]
        %v1229 = vld [vmem:[#allocation2 + $0x8] sm:$0xff]
        %v1230 = vld [vmem:[#allocation2 + $0x10] sm:$0xff]
        %v1231 = vld [vmem:[#allocation2 + $0x18] sm:$0xff]
        %v1232 = vld [vmem:[#allocation2 + $0x20] sm:$0xff]
        %v1233 = vld [vmem:[#allocation2 + $0x28] sm:$0xff]
        %v1234 = vld [vmem:[#allocation2 + $0x30] sm:$0xff]
        %v1235 = vld [vmem:[#allocation2 + $0x38] sm:$0xff]
        %v1236 = vld [vmem:[#allocation2 + $0x40] sm:$0xff]
        %v1237 = vld [vmem:[#allocation2 + $0x48] sm:$0xff]
        %v1238 = vld [vmem:[#allocation2 + $0x50] sm:$0xff]
        %v1239 = vld [vmem:[#allocation2 + $0x58] sm:$0xff]
        %v1240 = vld [vmem:[#allocation2 + $0x60] sm:$0xff]
        %v1241 = vld [vmem:[#allocation2 + $0x68] sm:$0xff]
        %v1242 = vld [vmem:[#allocation2 + $0x70] sm:$0xff]
        %v1243 = vld [vmem:[#allocation2 + $0x78] sm:$0x7f]
        %vm1260 = vcmask 1046528
        %v1261 = vrot.slane %v1166, 1
        %v1262 = vrot.slane %v1169, 1
        %v1263 = vsel %vm1260, %v1261, %v1262
        %v1264 = vrot.slane %v1174, 1
        %v1265 = vsel %vm1260, %v1262, %v1264
        %v1266 = vrot.slane %v1177, 1
        %v1267 = vsel %vm1260, %v1264, %v1266
        %v1268 = vrot.slane %v1182, 1
        %v1269 = vsel %vm1260, %v1266, %v1268
        %v1270 = vrot.slane %v1185, 1
        %v1271 = vsel %vm1260, %v1268, %v1270
        %v1272 = vrot.slane %v1190, 1
        %v1273 = vsel %vm1260, %v1270, %v1272
        %v1274 = vrot.slane %v1193, 1
        %v1275 = vsel %vm1260, %v1272, %v1274
        %v1276 = vrot.slane %v1198, 1
        %v1277 = vsel %vm1260, %v1274, %v1276
        %v1278 = vrot.slane %v1201, 1
        %v1279 = vsel %vm1260, %v1276, %v1278
        %v1280 = vrot.slane %v1206, 1
        %v1281 = vsel %vm1260, %v1278, %v1280
        %v1282 = vrot.slane %v1209, 1
        %v1283 = vsel %vm1260, %v1280, %v1282
        %v1284 = vrot.slane %v1214, 1
        %v1285 = vsel %vm1260, %v1282, %v1284
        %v1286 = vrot.slane %v1217, 1
        %v1287 = vsel %vm1260, %v1284, %v1286
        %v1288 = vrot.slane %v1222, 1
        %v1289 = vsel %vm1260, %v1286, %v1288
        %v1290 = vrot.slane %v1225, 1
        %v1291 = vsel %vm1260, %v1288, %v1290
        %v1308 = vadd.f32 %v1228, %v1263
        %v1309 = vadd.f32 %v1229, %v1265
        %v1310 = vadd.f32 %v1230, %v1267
        %v1311 = vadd.f32 %v1231, %v1269
        %v1312 = vadd.f32 %v1232, %v1271
        %v1313 = vadd.f32 %v1233, %v1273
        %v1314 = vadd.f32 %v1234, %v1275
        %v1315 = vadd.f32 %v1235, %v1277
        %v1316 = vadd.f32 %v1236, %v1279
        %v1317 = vadd.f32 %v1237, %v1281
        %v1318 = vadd.f32 %v1238, %v1283
        %v1319 = vadd.f32 %v1239, %v1285
        %v1320 = vadd.f32 %v1240, %v1287
        %v1321 = vadd.f32 %v1241, %v1289
        %v1322 = vadd.f32 %v1242, %v1291
        %v1323 = vadd.f32 %v1243, %v1290
        %1324 = vst [vmem:[#allocation2] sm:$0xff] %v1308
        %1325 = vst [vmem:[#allocation2 + $0x8] sm:$0xff] %v1309
        %1326 = vst [vmem:[#allocation2 + $0x10] sm:$0xff] %v1310
        %1327 = vst [vmem:[#allocation2 + $0x18] sm:$0xff] %v1311
        %1328 = vst [vmem:[#allocation2 + $0x20] sm:$0xff] %v1312
        %1329 = vst [vmem:[#allocation2 + $0x28] sm:$0xff] %v1313
        %1330 = vst [vmem:[#allocation2 + $0x30] sm:$0xff] %v1314
        %1331 = vst [vmem:[#allocation2 + $0x38] sm:$0xff] %v1315
        %1332 = vst [vmem:[#allocation2 + $0x40] sm:$0xff] %v1316
        %1333 = vst [vmem:[#allocation2 + $0x48] sm:$0xff] %v1317
        %1334 = vst [vmem:[#allocation2 + $0x50] sm:$0xff] %v1318
        %1335 = vst [vmem:[#allocation2 + $0x58] sm:$0xff] %v1319
        %1336 = vst [vmem:[#allocation2 + $0x60] sm:$0xff] %v1320
        %1337 = vst [vmem:[#allocation2 + $0x68] sm:$0xff] %v1321
        %1338 = vst [vmem:[#allocation2 + $0x70] sm:$0xff] %v1322
        %1339 = vst [vmem:[#allocation2 + $0x78] sm:$0x7f] %v1323
        %s1340 = scalar_lea.vmem [#allocation9], 256
        %v1341 = vld [vmem:[%s1340] sm:$0xf]
        %v1342 = vld [vmem:[%s1340 + $0x4] sm:$0xf]
        %v1343 = vld [vmem:[%s1340 + $0x8] sm:$0xf]
        %v1344 = vld [vmem:[%s1340 + $0xc] sm:$0xf]
        %v1345 = vld [vmem:[%s1340 + $0x10] sm:$0xf]
        %v1346 = vld [vmem:[%s1340 + $0x14] sm:$0xf]
        %v1347 = vld [vmem:[%s1340 + $0x18] sm:$0xf]
        %v1348 = vld [vmem:[%s1340 + $0x1c] sm:$0xf]
        %v1349 = vld [vmem:[%s1340 + $0x20] sm:$0xf]
        %v1350 = vld [vmem:[%s1340 + $0x24] sm:$0xf]
        %v1351 = vld [vmem:[%s1340 + $0x28] sm:$0xf]
        %v1352 = vld [vmem:[%s1340 + $0x2c] sm:$0xf]
        %v1353 = vld [vmem:[%s1340 + $0x30] sm:$0xf]
        %v1354 = vld [vmem:[%s1340 + $0x34] sm:$0xf]
        %v1355 = vld [vmem:[%s1340 + $0x38] sm:$0xf]
        %v1356 = vld [vmem:[%s1340 + $0x3c] sm:$0xf]
        %v1373 = vunpack.c.l.b16 %v1341
        %v1374 = vunpack.c.l.b16 %v1342
        %v1375 = vunpack.c.l.b16 %v1343
        %v1376 = vunpack.c.l.b16 %v1344
        %v1377 = vunpack.c.l.b16 %v1345
        %v1378 = vunpack.c.l.b16 %v1346
        %v1379 = vunpack.c.l.b16 %v1347
        %v1380 = vunpack.c.l.b16 %v1348
        %v1381 = vunpack.c.l.b16 %v1349
        %v1382 = vunpack.c.l.b16 %v1350
        %v1383 = vunpack.c.l.b16 %v1351
        %v1384 = vunpack.c.l.b16 %v1352
        %v1385 = vunpack.c.l.b16 %v1353
        %v1386 = vunpack.c.l.b16 %v1354
        %v1387 = vunpack.c.l.b16 %v1355
        %v1388 = vunpack.c.l.b16 %v1356
        %v1389 = vpack.c.b16 %v1374, %v1373
        %v1390 = vpack.c.b16 %v1376, %v1375
        %v1391 = vpack.c.b16 %v1378, %v1377
        %v1392 = vpack.c.b16 %v1380, %v1379
        %v1393 = vpack.c.b16 %v1382, %v1381
        %v1394 = vpack.c.b16 %v1384, %v1383
        %v1395 = vpack.c.b16 %v1386, %v1385
        %v1396 = vpack.c.b16 %v1388, %v1387
        %1405 = vmatprep.subr.bf16.mxu0 0
        %1406 = vmatpush1.bf16.msra.mxu0 %v1389
        %1407 = vmatprep.subr.bf16.mxu0 0
        %1408 = vmatpush1.bf16.msra.mxu0 %v1390
        %1409 = vmatprep.subr.bf16.mxu0 0
        %1410 = vmatpush1.bf16.msra.mxu0 %v1391
        %1411 = vmatprep.subr.bf16.mxu0 0
        %1412 = vmatpush1.bf16.msra.mxu0 %v1392
        %1413 = vmatprep.subr.bf16.mxu0 0
        %1414 = vmatpush1.bf16.msra.mxu0 %v1393
        %1415 = vmatprep.subr.bf16.mxu0 0
        %1416 = vmatpush1.bf16.msra.mxu0 %v1394
        %1417 = vmatprep.subr.bf16.mxu0 0
        %1418 = vmatpush1.bf16.msra.mxu0 %v1395
        %1419 = vmatprep.subr.bf16.mxu0 0
        %1420 = vmatpush1.bf16.msra.mxu0 %v1396
        %1421 = vmatprep.subr.bf16.mxu0 0
        %1422 = vmatpush1.bf16.msra.mxu0 0
        %1423 = vmatprep.subr.bf16.mxu0 0
        %1424 = vmatpush1.bf16.msra.mxu0 0
        %1425 = vmatprep.subr.bf16.mxu0 0
        %1426 = vmatpush1.bf16.msra.mxu0 0
        %1427 = vmatprep.subr.bf16.mxu0 0
        %1428 = vmatpush1.bf16.msra.mxu0 0
        %1429 = vmatprep.subr.bf16.mxu0 0
        %1430 = vmatpush1.bf16.msra.mxu0 0
        %1431 = vmatprep.subr.bf16.mxu0 0
        %1432 = vmatpush1.bf16.msra.mxu0 0
        %1433 = vmatprep.subr.bf16.mxu0 0
        %1434 = vmatpush1.bf16.msra.mxu0 0
        %1435 = vmatprep.subr.bf16.mxu0 0
        %1436 = vmatpush1.bf16.msra.mxu0 0
        %1437 = vmatprep.mubr.bf16.mxu0 0
        %1438 = vmatmul.mubr.bf16.gmra.mrb[0].mxu0 %v470
        %v1439 = vpop.f32.mrb[0].mxu0
        %v1440 = vadd.f32 0.0, %v1439
        %v1441 = vpop.f32.mrb[0].mxu0
        %v1442 = vpop.f32.mrb[0].mxu0
        %v1443 = vadd.f32 0.0, %v1442
        %v1444 = vpop.f32.mrb[0].mxu0
        %1445 = vmatprep.mubr.bf16.mxu0 0
        %1446 = vmatmul.mubr.bf16.gmra.mrb[0].mxu0 %v471
        %v1447 = vpop.f32.mrb[0].mxu0
        %v1448 = vadd.f32 0.0, %v1447
        %v1449 = vpop.f32.mrb[0].mxu0
        %v1450 = vpop.f32.mrb[0].mxu0
        %v1451 = vadd.f32 0.0, %v1450
        %v1452 = vpop.f32.mrb[0].mxu0
        %1453 = vmatprep.mubr.bf16.mxu0 0
        %1454 = vmatmul.mubr.bf16.gmra.mrb[0].mxu0 %v472
        %v1455 = vpop.f32.mrb[0].mxu0
        %v1456 = vadd.f32 0.0, %v1455
        %v1457 = vpop.f32.mrb[0].mxu0
        %v1458 = vpop.f32.mrb[0].mxu0
        %v1459 = vadd.f32 0.0, %v1458
        %v1460 = vpop.f32.mrb[0].mxu0
        %1461 = vmatprep.mubr.bf16.mxu0 0
        %1462 = vmatmul.mubr.bf16.gmra.mrb[0].mxu0 %v473
        %v1463 = vpop.f32.mrb[0].mxu0
        %v1464 = vadd.f32 0.0, %v1463
        %v1465 = vpop.f32.mrb[0].mxu0
        %v1466 = vpop.f32.mrb[0].mxu0
        %v1467 = vadd.f32 0.0, %v1466
        %v1468 = vpop.f32.mrb[0].mxu0
        %1469 = vmatprep.mubr.bf16.mxu0 0
        %1470 = vmatmul.mubr.bf16.gmra.mrb[0].mxu0 %v474
        %v1471 = vpop.f32.mrb[0].mxu0
        %v1472 = vadd.f32 0.0, %v1471
        %v1473 = vpop.f32.mrb[0].mxu0
        %v1474 = vpop.f32.mrb[0].mxu0
        %v1475 = vadd.f32 0.0, %v1474
        %v1476 = vpop.f32.mrb[0].mxu0
        %1477 = vmatprep.mubr.bf16.mxu0 0
        %1478 = vmatmul.mubr.bf16.gmra.mrb[0].mxu0 %v475
        %v1479 = vpop.f32.mrb[0].mxu0
        %v1480 = vadd.f32 0.0, %v1479
        %v1481 = vpop.f32.mrb[0].mxu0
        %v1482 = vpop.f32.mrb[0].mxu0
        %v1483 = vadd.f32 0.0, %v1482
        %v1484 = vpop.f32.mrb[0].mxu0
        %1485 = vmatprep.mubr.bf16.mxu0 0
        %1486 = vmatmul.mubr.bf16.gmra.mrb[0].mxu0 %v476
        %v1487 = vpop.f32.mrb[0].mxu0
        %v1488 = vadd.f32 0.0, %v1487
        %v1489 = vpop.f32.mrb[0].mxu0
        %v1490 = vpop.f32.mrb[0].mxu0
        %v1491 = vadd.f32 0.0, %v1490
        %v1492 = vpop.f32.mrb[0].mxu0
        %1493 = vmatprep.mubr.bf16.mxu0 0
        %1494 = vmatmul.mubr.bf16.gmra.mrb[0].mxu0 %v477
        %v1495 = vpop.f32.mrb[0].mxu0
        %v1496 = vadd.f32 0.0, %v1495
        %v1497 = vpop.f32.mrb[0].mxu0
        %v1498 = vpop.f32.mrb[0].mxu0
        %v1499 = vadd.f32 0.0, %v1498
        %v1500 = vpop.f32.mrb[0].mxu0
        %1501 = vdwg.mxu0
        %v1502 = vld [vmem:[#allocation2] sm:$0xff]
        %v1503 = vld [vmem:[#allocation2 + $0x8] sm:$0xff]
        %v1504 = vld [vmem:[#allocation2 + $0x10] sm:$0xff]
        %v1505 = vld [vmem:[#allocation2 + $0x18] sm:$0xff]
        %v1506 = vld [vmem:[#allocation2 + $0x20] sm:$0xff]
        %v1507 = vld [vmem:[#allocation2 + $0x28] sm:$0xff]
        %v1508 = vld [vmem:[#allocation2 + $0x30] sm:$0xff]
        %v1509 = vld [vmem:[#allocation2 + $0x38] sm:$0xff]
        %v1510 = vld [vmem:[#allocation2 + $0x40] sm:$0xff]
        %v1511 = vld [vmem:[#allocation2 + $0x48] sm:$0xff]
        %v1512 = vld [vmem:[#allocation2 + $0x50] sm:$0xff]
        %v1513 = vld [vmem:[#allocation2 + $0x58] sm:$0xff]
        %v1514 = vld [vmem:[#allocation2 + $0x60] sm:$0xff]
        %v1515 = vld [vmem:[#allocation2 + $0x68] sm:$0xff]
        %v1516 = vld [vmem:[#allocation2 + $0x70] sm:$0xff]
        %v1517 = vld [vmem:[#allocation2 + $0x78] sm:$0x3f]
        %vm1534 = vcmask 1045504
        %v1535 = vrot.slane %v1440, 2
        %v1536 = vrot.slane %v1443, 2
        %v1537 = vsel %vm1534, %v1535, %v1536
        %v1538 = vrot.slane %v1448, 2
        %v1539 = vsel %vm1534, %v1536, %v1538
        %v1540 = vrot.slane %v1451, 2
        %v1541 = vsel %vm1534, %v1538, %v1540
        %v1542 = vrot.slane %v1456, 2
        %v1543 = vsel %vm1534, %v1540, %v1542
        %v1544 = vrot.slane %v1459, 2
        %v1545 = vsel %vm1534, %v1542, %v1544
        %v1546 = vrot.slane %v1464, 2
        %v1547 = vsel %vm1534, %v1544, %v1546
        %v1548 = vrot.slane %v1467, 2
        %v1549 = vsel %vm1534, %v1546, %v1548
        %v1550 = vrot.slane %v1472, 2
        %v1551 = vsel %vm1534, %v1548, %v1550
        %v1552 = vrot.slane %v1475, 2
        %v1553 = vsel %vm1534, %v1550, %v1552
        %v1554 = vrot.slane %v1480, 2
        %v1555 = vsel %vm1534, %v1552, %v1554
        %v1556 = vrot.slane %v1483, 2
        %v1557 = vsel %vm1534, %v1554, %v1556
        %v1558 = vrot.slane %v1488, 2
        %v1559 = vsel %vm1534, %v1556, %v1558
        %v1560 = vrot.slane %v1491, 2
        %v1561 = vsel %vm1534, %v1558, %v1560
        %v1562 = vrot.slane %v1496, 2
        %v1563 = vsel %vm1534, %v1560, %v1562
        %v1564 = vrot.slane %v1499, 2
        %v1565 = vsel %vm1534, %v1562, %v1564
        %v1582 = vadd.f32 %v1502, %v1537
        %v1583 = vadd.f32 %v1503, %v1539
        %v1584 = vadd.f32 %v1504, %v1541
        %v1585 = vadd.f32 %v1505, %v1543
        %v1586 = vadd.f32 %v1506, %v1545
        %v1587 = vadd.f32 %v1507, %v1547
        %v1588 = vadd.f32 %v1508, %v1549
        %v1589 = vadd.f32 %v1509, %v1551
        %v1590 = vadd.f32 %v1510, %v1553
        %v1591 = vadd.f32 %v1511, %v1555
        %v1592 = vadd.f32 %v1512, %v1557
        %v1593 = vadd.f32 %v1513, %v1559
        %v1594 = vadd.f32 %v1514, %v1561
        %v1595 = vadd.f32 %v1515, %v1563
        %v1596 = vadd.f32 %v1516, %v1565
        %v1597 = vadd.f32 %v1517, %v1564
        %1598 = vst [vmem:[#allocation2] sm:$0xff] %v1582
        %1599 = vst [vmem:[#allocation2 + $0x8] sm:$0xff] %v1583
        %1600 = vst [vmem:[#allocation2 + $0x10] sm:$0xff] %v1584
        %1601 = vst [vmem:[#allocation2 + $0x18] sm:$0xff] %v1585
        %1602 = vst [vmem:[#allocation2 + $0x20] sm:$0xff] %v1586
        %1603 = vst [vmem:[#allocation2 + $0x28] sm:$0xff] %v1587
        %1604 = vst [vmem:[#allocation2 + $0x30] sm:$0xff] %v1588
        %1605 = vst [vmem:[#allocation2 + $0x38] sm:$0xff] %v1589
        %1606 = vst [vmem:[#allocation2 + $0x40] sm:$0xff] %v1590
        %1607 = vst [vmem:[#allocation2 + $0x48] sm:$0xff] %v1591
        %1608 = vst [vmem:[#allocation2 + $0x50] sm:$0xff] %v1592
        %1609 = vst [vmem:[#allocation2 + $0x58] sm:$0xff] %v1593
        %1610 = vst [vmem:[#allocation2 + $0x60] sm:$0xff] %v1594
        %1611 = vst [vmem:[#allocation2 + $0x68] sm:$0xff] %v1595
        %1612 = vst [vmem:[#allocation2 + $0x70] sm:$0xff] %v1596
        %1613 = vst [vmem:[#allocation2 + $0x78] sm:$0x3f] %v1597
        %p1614 = scmp.gt.s32.totalorder %s31, 0
        // Predicated region
        $region57: #{res_conv1d_nlc.1} parent=39 // pred_check
          %p1615 = pneg %p1614
        $region58: #{res_conv1d_nlc.1} parent=39 // pred_check_branch
          %1617 = sbr.rel (%p1615) target = $region60
        $region59: #{res_conv1d_nlc.1} parent=39 // pred_region
          %v1618 = vld [vmem:[%s335 + $0x4] sm:$0xf]
          %v1619 = vld [vmem:[#allocation2] sm:$0x3]
          %v1620 = vld [vmem:[#allocation9] sm:$0xf]
          %v1621 = vld [vmem:[#allocation9 + $0x4] sm:$0xf]
          %v1622 = vld [vmem:[#allocation9 + $0x8] sm:$0xf]
          %v1623 = vld [vmem:[#allocation9 + $0xc] sm:$0xf]
          %v1624 = vld [vmem:[#allocation9 + $0x10] sm:$0xf]
          %v1625 = vld [vmem:[#allocation9 + $0x14] sm:$0xf]
          %v1626 = vld [vmem:[#allocation9 + $0x18] sm:$0xf]
          %v1627 = vld [vmem:[#allocation9 + $0x1c] sm:$0xf]
          %v1628 = vld [vmem:[#allocation9 + $0x20] sm:$0xf]
          %v1629 = vld [vmem:[#allocation9 + $0x24] sm:$0xf]
          %v1630 = vld [vmem:[#allocation9 + $0x28] sm:$0xf]
          %v1631 = vld [vmem:[#allocation9 + $0x2c] sm:$0xf]
          %v1632 = vld [vmem:[#allocation9 + $0x30] sm:$0xf]
          %v1633 = vld [vmem:[#allocation9 + $0x34] sm:$0xf]
          %v1634 = vld [vmem:[#allocation9 + $0x38] sm:$0xf]
          %v1635 = vld [vmem:[#allocation9 + $0x3c] sm:$0xf]
          %v1637 = vunpack.c.l.b16 %v1618
          %v1638 = vpack.c.b16 %v1637, %v1637
          %v1639 = vrot.slane %v1638, 3
          %v1657 = vunpack.c.l.b16 %v1620
          %v1658 = vunpack.c.l.b16 %v1621
          %v1659 = vunpack.c.l.b16 %v1622
          %v1660 = vunpack.c.l.b16 %v1623
          %v1661 = vunpack.c.l.b16 %v1624
          %v1662 = vunpack.c.l.b16 %v1625
          %v1663 = vunpack.c.l.b16 %v1626
          %v1664 = vunpack.c.l.b16 %v1627
          %v1665 = vunpack.c.l.b16 %v1628
          %v1666 = vunpack.c.l.b16 %v1629
          %v1667 = vunpack.c.l.b16 %v1630
          %v1668 = vunpack.c.l.b16 %v1631
          %v1669 = vunpack.c.l.b16 %v1632
          %v1670 = vunpack.c.l.b16 %v1633
          %v1671 = vunpack.c.l.b16 %v1634
          %v1672 = vunpack.c.l.b16 %v1635
          %v1673 = vpack.c.b16 %v1658, %v1657
          %v1674 = vpack.c.b16 %v1660, %v1659
          %v1675 = vpack.c.b16 %v1662, %v1661
          %v1676 = vpack.c.b16 %v1664, %v1663
          %v1677 = vpack.c.b16 %v1666, %v1665
          %v1678 = vpack.c.b16 %v1668, %v1667
          %v1679 = vpack.c.b16 %v1670, %v1669
          %v1680 = vpack.c.b16 %v1672, %v1671
          %1689 = vmatprep.subr.bf16.mxu0 0
          %1690 = vmatpush1.bf16.msra.mxu0 %v1673
          %1691 = vmatprep.subr.bf16.mxu0 0
          %1692 = vmatpush1.bf16.msra.mxu0 %v1674
          %1693 = vmatprep.subr.bf16.mxu0 0
          %1694 = vmatpush1.bf16.msra.mxu0 %v1675
          %1695 = vmatprep.subr.bf16.mxu0 0
          %1696 = vmatpush1.bf16.msra.mxu0 %v1676
          %1697 = vmatprep.subr.bf16.mxu0 0
          %1698 = vmatpush1.bf16.msra.mxu0 %v1677
          %1699 = vmatprep.subr.bf16.mxu0 0
          %1700 = vmatpush1.bf16.msra.mxu0 %v1678
          %1701 = vmatprep.subr.bf16.mxu0 0
          %1702 = vmatpush1.bf16.msra.mxu0 %v1679
          %1703 = vmatprep.subr.bf16.mxu0 0
          %1704 = vmatpush1.bf16.msra.mxu0 %v1680
          %1705 = vmatprep.subr.bf16.mxu0 0
          %1706 = vmatpush1.bf16.msra.mxu0 0
          %1707 = vmatprep.subr.bf16.mxu0 0
          %1708 = vmatpush1.bf16.msra.mxu0 0
          %1709 = vmatprep.subr.bf16.mxu0 0
          %1710 = vmatpush1.bf16.msra.mxu0 0
          %1711 = vmatprep.subr.bf16.mxu0 0
          %1712 = vmatpush1.bf16.msra.mxu0 0
          %1713 = vmatprep.subr.bf16.mxu0 0
          %1714 = vmatpush1.bf16.msra.mxu0 0
          %1715 = vmatprep.subr.bf16.mxu0 0
          %1716 = vmatpush1.bf16.msra.mxu0 0
          %1717 = vmatprep.subr.bf16.mxu0 0
          %1718 = vmatpush1.bf16.msra.mxu0 0
          %1719 = vmatprep.subr.bf16.mxu0 0
          %1720 = vmatpush1.bf16.msra.mxu0 0
          %1721 = vmatprep.mubr.bf16.mxu0 0
          %1722 = vmatmul.mubr.bf16.gmra.mrb[0].mxu0 %v1639
          %v1723 = vpop.f32.mrb[0].mxu0
          %v1724 = vadd.f32 0.0, %v1723
          %v1725 = vpop.f32.mrb[0].mxu0
          %v1726 = vpop.f32.mrb[0].mxu0
          %v1727 = vpop.f32.mrb[0].mxu0
          %1728 = vdwg.mxu0
          %v1729 = vadd.f32 %v1619, %v1724
          %1730 = vst [vmem:[#allocation2] sm:$0x3] %v1729
          %v1731 = vld [vmem:[#allocation2] sm:$0x1]
          %v1732 = vld [vmem:[%s856] sm:$0xf]
          %v1733 = vld [vmem:[%s856 + $0x4] sm:$0xf]
          %v1734 = vld [vmem:[%s856 + $0x8] sm:$0xf]
          %v1735 = vld [vmem:[%s856 + $0xc] sm:$0xf]
          %v1736 = vld [vmem:[%s856 + $0x10] sm:$0xf]
          %v1737 = vld [vmem:[%s856 + $0x14] sm:$0xf]
          %v1738 = vld [vmem:[%s856 + $0x18] sm:$0xf]
          %v1739 = vld [vmem:[%s856 + $0x1c] sm:$0xf]
          %v1740 = vld [vmem:[%s856 + $0x20] sm:$0xf]
          %v1741 = vld [vmem:[%s856 + $0x24] sm:$0xf]
          %v1742 = vld [vmem:[%s856 + $0x28] sm:$0xf]
          %v1743 = vld [vmem:[%s856 + $0x2c] sm:$0xf]
          %v1744 = vld [vmem:[%s856 + $0x30] sm:$0xf]
          %v1745 = vld [vmem:[%s856 + $0x34] sm:$0xf]
          %v1746 = vld [vmem:[%s856 + $0x38] sm:$0xf]
          %v1747 = vld [vmem:[%s856 + $0x3c] sm:$0xf]
          %v1749 = vshrl.u32 %v1638, 16
          %v1751 = vrot.slane %v1749, 3
          %v1769 = vunpack.c.l.b16 %v1732
          %v1770 = vunpack.c.l.b16 %v1733
          %v1771 = vunpack.c.l.b16 %v1734
          %v1772 = vunpack.c.l.b16 %v1735
          %v1773 = vunpack.c.l.b16 %v1736
          %v1774 = vunpack.c.l.b16 %v1737
          %v1775 = vunpack.c.l.b16 %v1738
          %v1776 = vunpack.c.l.b16 %v1739
          %v1777 = vunpack.c.l.b16 %v1740
          %v1778 = vunpack.c.l.b16 %v1741
          %v1779 = vunpack.c.l.b16 %v1742
          %v1780 = vunpack.c.l.b16 %v1743
          %v1781 = vunpack.c.l.b16 %v1744
          %v1782 = vunpack.c.l.b16 %v1745
          %v1783 = vunpack.c.l.b16 %v1746
          %v1784 = vunpack.c.l.b16 %v1747
          %v1785 = vpack.c.b16 %v1770, %v1769
          %v1786 = vpack.c.b16 %v1772, %v1771
          %v1787 = vpack.c.b16 %v1774, %v1773
          %v1788 = vpack.c.b16 %v1776, %v1775
          %v1789 = vpack.c.b16 %v1778, %v1777
          %v1790 = vpack.c.b16 %v1780, %v1779
          %v1791 = vpack.c.b16 %v1782, %v1781
          %v1792 = vpack.c.b16 %v1784, %v1783
          %1801 = vmatprep.subr.bf16.mxu0 0
          %1802 = vmatpush1.bf16.msra.mxu0 %v1785
          %1803 = vmatprep.subr.bf16.mxu0 0
          %1804 = vmatpush1.bf16.msra.mxu0 %v1786
          %1805 = vmatprep.subr.bf16.mxu0 0
          %1806 = vmatpush1.bf16.msra.mxu0 %v1787
          %1807 = vmatprep.subr.bf16.mxu0 0
          %1808 = vmatpush1.bf16.msra.mxu0 %v1788
          %1809 = vmatprep.subr.bf16.mxu0 0
          %1810 = vmatpush1.bf16.msra.mxu0 %v1789
          %1811 = vmatprep.subr.bf16.mxu0 0
          %1812 = vmatpush1.bf16.msra.mxu0 %v1790
          %1813 = vmatprep.subr.bf16.mxu0 0
          %1814 = vmatpush1.bf16.msra.mxu0 %v1791
          %1815 = vmatprep.subr.bf16.mxu0 0
          %1816 = vmatpush1.bf16.msra.mxu0 %v1792
          %1817 = vmatprep.subr.bf16.mxu0 0
          %1818 = vmatpush1.bf16.msra.mxu0 0
          %1819 = vmatprep.subr.bf16.mxu0 0
          %1820 = vmatpush1.bf16.msra.mxu0 0
          %1821 = vmatprep.subr.bf16.mxu0 0
          %1822 = vmatpush1.bf16.msra.mxu0 0
          %1823 = vmatprep.subr.bf16.mxu0 0
          %1824 = vmatpush1.bf16.msra.mxu0 0
          %1825 = vmatprep.subr.bf16.mxu0 0
          %1826 = vmatpush1.bf16.msra.mxu0 0
          %1827 = vmatprep.subr.bf16.mxu0 0
          %1828 = vmatpush1.bf16.msra.mxu0 0
          %1829 = vmatprep.subr.bf16.mxu0 0
          %1830 = vmatpush1.bf16.msra.mxu0 0
          %1831 = vmatprep.subr.bf16.mxu0 0
          %1832 = vmatpush1.bf16.msra.mxu0 0
          %1833 = vmatprep.mubr.bf16.mxu0 0
          %1834 = vmatmul.mubr.bf16.gmra.mrb[0].mxu0 %v1751
          %v1835 = vpop.f32.mrb[0].mxu0
          %v1836 = vadd.f32 0.0, %v1835
          %v1837 = vpop.f32.mrb[0].mxu0
          %v1838 = vpop.f32.mrb[0].mxu0
          %v1839 = vpop.f32.mrb[0].mxu0
          %1840 = vdwg.mxu0
          %v1841 = vadd.f32 %v1731, %v1836
          %1842 = vst [vmem:[#allocation2] sm:$0x1] %v1841
        $region60: #{res_conv1d_nlc.1} parent=39 // pred_fallthru
          _
        %p1843 = scmp.lt.s32.totalorder %s31, 2
        // Predicated region
        $region61: #{res_conv1d_nlc.1} parent=39 // pred_check
          %p1844 = pneg %p1843
        $region62: #{res_conv1d_nlc.1} parent=39 // pred_check_branch
          %1846 = sbr.rel (%p1844) target = $region64
        $region63: #{res_conv1d_nlc.1} parent=39 // pred_region
          %v1847 = vld [vmem:[%s344] sm:$0xf]
          %v1848 = vld [vmem:[#allocation2 + $0x7f] sm:$0x1]
          %v1849 = vld [vmem:[%s1066] sm:$0xf]
          %v1850 = vld [vmem:[%s1066 + $0x4] sm:$0xf]
          %v1851 = vld [vmem:[%s1066 + $0x8] sm:$0xf]
          %v1852 = vld [vmem:[%s1066 + $0xc] sm:$0xf]
          %v1853 = vld [vmem:[%s1066 + $0x10] sm:$0xf]
          %v1854 = vld [vmem:[%s1066 + $0x14] sm:$0xf]
          %v1855 = vld [vmem:[%s1066 + $0x18] sm:$0xf]
          %v1856 = vld [vmem:[%s1066 + $0x1c] sm:$0xf]
          %v1857 = vld [vmem:[%s1066 + $0x20] sm:$0xf]
          %v1858 = vld [vmem:[%s1066 + $0x24] sm:$0xf]
          %v1859 = vld [vmem:[%s1066 + $0x28] sm:$0xf]
          %v1860 = vld [vmem:[%s1066 + $0x2c] sm:$0xf]
          %v1861 = vld [vmem:[%s1066 + $0x30] sm:$0xf]
          %v1862 = vld [vmem:[%s1066 + $0x34] sm:$0xf]
          %v1863 = vld [vmem:[%s1066 + $0x38] sm:$0xf]
          %v1864 = vld [vmem:[%s1066 + $0x3c] sm:$0xf]
          %v1881 = vunpack.c.l.b16 %v1849
          %v1882 = vunpack.c.l.b16 %v1850
          %v1883 = vunpack.c.l.b16 %v1851
          %v1884 = vunpack.c.l.b16 %v1852
          %v1885 = vunpack.c.l.b16 %v1853
          %v1886 = vunpack.c.l.b16 %v1854
          %v1887 = vunpack.c.l.b16 %v1855
          %v1888 = vunpack.c.l.b16 %v1856
          %v1889 = vunpack.c.l.b16 %v1857
          %v1890 = vunpack.c.l.b16 %v1858
          %v1891 = vunpack.c.l.b16 %v1859
          %v1892 = vunpack.c.l.b16 %v1860
          %v1893 = vunpack.c.l.b16 %v1861
          %v1894 = vunpack.c.l.b16 %v1862
          %v1895 = vunpack.c.l.b16 %v1863
          %v1896 = vunpack.c.l.b16 %v1864
          %v1897 = vpack.c.b16 %v1882, %v1881
          %v1898 = vpack.c.b16 %v1884, %v1883
          %v1899 = vpack.c.b16 %v1886, %v1885
          %v1900 = vpack.c.b16 %v1888, %v1887
          %v1901 = vpack.c.b16 %v1890, %v1889
          %v1902 = vpack.c.b16 %v1892, %v1891
          %v1903 = vpack.c.b16 %v1894, %v1893
          %v1904 = vpack.c.b16 %v1896, %v1895
          %1913 = vmatprep.subr.bf16.mxu0 0
          %1914 = vmatpush1.bf16.msra.mxu0 %v1897
          %1915 = vmatprep.subr.bf16.mxu0 0
          %1916 = vmatpush1.bf16.msra.mxu0 %v1898
          %1917 = vmatprep.subr.bf16.mxu0 0
          %1918 = vmatpush1.bf16.msra.mxu0 %v1899
          %1919 = vmatprep.subr.bf16.mxu0 0
          %1920 = vmatpush1.bf16.msra.mxu0 %v1900
          %1921 = vmatprep.subr.bf16.mxu0 0
          %1922 = vmatpush1.bf16.msra.mxu0 %v1901
          %1923 = vmatprep.subr.bf16.mxu0 0
          %1924 = vmatpush1.bf16.msra.mxu0 %v1902
          %1925 = vmatprep.subr.bf16.mxu0 0
          %1926 = vmatpush1.bf16.msra.mxu0 %v1903
          %1927 = vmatprep.subr.bf16.mxu0 0
          %1928 = vmatpush1.bf16.msra.mxu0 %v1904
          %1929 = vmatprep.subr.bf16.mxu0 0
          %1930 = vmatpush1.bf16.msra.mxu0 0
          %1931 = vmatprep.subr.bf16.mxu0 0
          %1932 = vmatpush1.bf16.msra.mxu0 0
          %1933 = vmatprep.subr.bf16.mxu0 0
          %1934 = vmatpush1.bf16.msra.mxu0 0
          %1935 = vmatprep.subr.bf16.mxu0 0
          %1936 = vmatpush1.bf16.msra.mxu0 0
          %1937 = vmatprep.subr.bf16.mxu0 0
          %1938 = vmatpush1.bf16.msra.mxu0 0
          %1939 = vmatprep.subr.bf16.mxu0 0
          %1940 = vmatpush1.bf16.msra.mxu0 0
          %1941 = vmatprep.subr.bf16.mxu0 0
          %1942 = vmatpush1.bf16.msra.mxu0 0
          %1943 = vmatprep.subr.bf16.mxu0 0
          %1944 = vmatpush1.bf16.msra.mxu0 0
          %1945 = vmatprep.mubr.bf16.mxu0 0
          %1946 = vmatmul.mubr.bf16.gmra.mrb[0].mxu0 %v1847
          %v1947 = vpop.f32.mrb[0].mxu0
          %v1948 = vadd.f32 0.0, %v1947
          %v1949 = vpop.f32.mrb[0].mxu0
          %v1950 = vpop.f32.mrb[0].mxu0
          %v1951 = vpop.f32.mrb[0].mxu0
          %1952 = vdwg.mxu0
          %v1953 = vadd.f32 %v1848, %v1948
          %1954 = vst [vmem:[#allocation2 + $0x7f] sm:$0x1] %v1953
          %v1955 = vld [vmem:[#allocation2 + $0x7e] sm:$0x3]
          %v1956 = vld [vmem:[%s1340] sm:$0xf]
          %v1957 = vld [vmem:[%s1340 + $0x4] sm:$0xf]
          %v1958 = vld [vmem:[%s1340 + $0x8] sm:$0xf]
          %v1959 = vld [vmem:[%s1340 + $0xc] sm:$0xf]
          %v1960 = vld [vmem:[%s1340 + $0x10] sm:$0xf]
          %v1961 = vld [vmem:[%s1340 + $0x14] sm:$0xf]
          %v1962 = vld [vmem:[%s1340 + $0x18] sm:$0xf]
          %v1963 = vld [vmem:[%s1340 + $0x1c] sm:$0xf]
          %v1964 = vld [vmem:[%s1340 + $0x20] sm:$0xf]
          %v1965 = vld [vmem:[%s1340 + $0x24] sm:$0xf]
          %v1966 = vld [vmem:[%s1340 + $0x28] sm:$0xf]
          %v1967 = vld [vmem:[%s1340 + $0x2c] sm:$0xf]
          %v1968 = vld [vmem:[%s1340 + $0x30] sm:$0xf]
          %v1969 = vld [vmem:[%s1340 + $0x34] sm:$0xf]
          %v1970 = vld [vmem:[%s1340 + $0x38] sm:$0xf]
          %v1971 = vld [vmem:[%s1340 + $0x3c] sm:$0xf]
          %v1988 = vunpack.c.l.b16 %v1956
          %v1989 = vunpack.c.l.b16 %v1957
          %v1990 = vunpack.c.l.b16 %v1958
          %v1991 = vunpack.c.l.b16 %v1959
          %v1992 = vunpack.c.l.b16 %v1960
          %v1993 = vunpack.c.l.b16 %v1961
          %v1994 = vunpack.c.l.b16 %v1962
          %v1995 = vunpack.c.l.b16 %v1963
          %v1996 = vunpack.c.l.b16 %v1964
          %v1997 = vunpack.c.l.b16 %v1965
          %v1998 = vunpack.c.l.b16 %v1966
          %v1999 = vunpack.c.l.b16 %v1967
          %v2000 = vunpack.c.l.b16 %v1968
          %v2001 = vunpack.c.l.b16 %v1969
          %v2002 = vunpack.c.l.b16 %v1970
          %v2003 = vunpack.c.l.b16 %v1971
          %v2004 = vpack.c.b16 %v1989, %v1988
          %v2005 = vpack.c.b16 %v1991, %v1990
          %v2006 = vpack.c.b16 %v1993, %v1992
          %v2007 = vpack.c.b16 %v1995, %v1994
          %v2008 = vpack.c.b16 %v1997, %v1996
          %v2009 = vpack.c.b16 %v1999, %v1998
          %v2010 = vpack.c.b16 %v2001, %v2000
          %v2011 = vpack.c.b16 %v2003, %v2002
          %2020 = vmatprep.subr.bf16.mxu0 0
          %2021 = vmatpush1.bf16.msra.mxu0 %v2004
          %2022 = vmatprep.subr.bf16.mxu0 0
          %2023 = vmatpush1.bf16.msra.mxu0 %v2005
          %2024 = vmatprep.subr.bf16.mxu0 0
          %2025 = vmatpush1.bf16.msra.mxu0 %v2006
          %2026 = vmatprep.subr.bf16.mxu0 0
          %2027 = vmatpush1.bf16.msra.mxu0 %v2007
          %2028 = vmatprep.subr.bf16.mxu0 0
          %2029 = vmatpush1.bf16.msra.mxu0 %v2008
          %2030 = vmatprep.subr.bf16.mxu0 0
          %2031 = vmatpush1.bf16.msra.mxu0 %v2009
          %2032 = vmatprep.subr.bf16.mxu0 0
          %2033 = vmatpush1.bf16.msra.mxu0 %v2010
          %2034 = vmatprep.subr.bf16.mxu0 0
          %2035 = vmatpush1.bf16.msra.mxu0 %v2011
          %2036 = vmatprep.subr.bf16.mxu0 0
          %2037 = vmatpush1.bf16.msra.mxu0 0
          %2038 = vmatprep.subr.bf16.mxu0 0
          %2039 = vmatpush1.bf16.msra.mxu0 0
          %2040 = vmatprep.subr.bf16.mxu0 0
          %2041 = vmatpush1.bf16.msra.mxu0 0
          %2042 = vmatprep.subr.bf16.mxu0 0
          %2043 = vmatpush1.bf16.msra.mxu0 0
          %2044 = vmatprep.subr.bf16.mxu0 0
          %2045 = vmatpush1.bf16.msra.mxu0 0
          %2046 = vmatprep.subr.bf16.mxu0 0
          %2047 = vmatpush1.bf16.msra.mxu0 0
          %2048 = vmatprep.subr.bf16.mxu0 0
          %2049 = vmatpush1.bf16.msra.mxu0 0
          %2050 = vmatprep.subr.bf16.mxu0 0
          %2051 = vmatpush1.bf16.msra.mxu0 0
          %2052 = vmatprep.mubr.bf16.mxu0 0
          %2053 = vmatmul.mubr.bf16.gmra.mrb[0].mxu0 %v1847
          %v2054 = vpop.f32.mrb[0].mxu0
          %v2055 = vadd.f32 0.0, %v2054
          %v2056 = vpop.f32.mrb[0].mxu0
          %v2057 = vpop.f32.mrb[0].mxu0
          %v2058 = vpop.f32.mrb[0].mxu0
          %2059 = vdwg.mxu0
          %v2060 = vadd.f32 %v1955, %v2055
          %2061 = vst [vmem:[#allocation2 + $0x7e] sm:$0x3] %v2060
        $region64: #{res_conv1d_nlc.1} parent=39 // pred_fallthru
          _
        %v2062 = vld [vmem:[#allocation2] sm:$0xff]
        %v2063 = vld [vmem:[#allocation2 + $0x8] sm:$0xff]
        %v2064 = vld [vmem:[#allocation2 + $0x10] sm:$0xff]
        %v2065 = vld [vmem:[#allocation2 + $0x18] sm:$0xff]
        %v2066 = vld [vmem:[#allocation2 + $0x20] sm:$0xff]
        %v2067 = vld [vmem:[#allocation2 + $0x28] sm:$0xff]
        %v2068 = vld [vmem:[#allocation2 + $0x30] sm:$0xff]
        %v2069 = vld [vmem:[#allocation2 + $0x38] sm:$0xff]
        %v2070 = vld [vmem:[#allocation2 + $0x40] sm:$0xff]
        %v2071 = vld [vmem:[#allocation2 + $0x48] sm:$0xff]
        %v2072 = vld [vmem:[#allocation2 + $0x50] sm:$0xff]
        %v2073 = vld [vmem:[#allocation2 + $0x58] sm:$0xff]
        %v2074 = vld [vmem:[#allocation2 + $0x60] sm:$0xff]
        %v2075 = vld [vmem:[#allocation2 + $0x68] sm:$0xff]
        %v2076 = vld [vmem:[#allocation2 + $0x70] sm:$0xff]
        %v2077 = vld [vmem:[#allocation2 + $0x78] sm:$0xff]
        %vm2078 = vcmp.gt.f32.partialorder %v2062, 0.0
        %vm2079 = vcmp.gt.f32.partialorder %v2063, 0.0
        %vm2080 = vcmp.gt.f32.partialorder %v2064, 0.0
        %vm2081 = vcmp.gt.f32.partialorder %v2065, 0.0
        %vm2082 = vcmp.gt.f32.partialorder %v2066, 0.0
        %vm2083 = vcmp.gt.f32.partialorder %v2067, 0.0
        %vm2084 = vcmp.gt.f32.partialorder %v2068, 0.0
        %vm2085 = vcmp.gt.f32.partialorder %v2069, 0.0
        %vm2086 = vcmp.gt.f32.partialorder %v2070, 0.0
        %vm2087 = vcmp.gt.f32.partialorder %v2071, 0.0
        %vm2088 = vcmp.gt.f32.partialorder %v2072, 0.0
        %vm2089 = vcmp.gt.f32.partialorder %v2073, 0.0
        %vm2090 = vcmp.gt.f32.partialorder %v2074, 0.0
        %vm2091 = vcmp.gt.f32.partialorder %v2075, 0.0
        %vm2092 = vcmp.gt.f32.partialorder %v2076, 0.0
        %vm2093 = vcmp.gt.f32.partialorder %v2077, 0.0
        %v2094 = vmul.f32 %v2062, 0.1
        %v2095 = vmul.f32 %v2063, 0.1
        %v2096 = vmul.f32 %v2064, 0.1
        %v2097 = vmul.f32 %v2065, 0.1
        %v2098 = vmul.f32 %v2066, 0.1
        %v2099 = vmul.f32 %v2067, 0.1
        %v2100 = vmul.f32 %v2068, 0.1
        %v2101 = vmul.f32 %v2069, 0.1
        %v2102 = vmul.f32 %v2070, 0.1
        %v2103 = vmul.f32 %v2071, 0.1
        %v2104 = vmul.f32 %v2072, 0.1
        %v2105 = vmul.f32 %v2073, 0.1
        %v2106 = vmul.f32 %v2074, 0.1
        %v2107 = vmul.f32 %v2075, 0.1
        %v2108 = vmul.f32 %v2076, 0.1
        %v2109 = vmul.f32 %v2077, 0.1
        %v2110 = vsel %vm2078, %v2062, %v2094
        %v2111 = vsel %vm2079, %v2063, %v2095
        %v2112 = vsel %vm2080, %v2064, %v2096
        %v2113 = vsel %vm2081, %v2065, %v2097
        %v2114 = vsel %vm2082, %v2066, %v2098
        %v2115 = vsel %vm2083, %v2067, %v2099
        %v2116 = vsel %vm2084, %v2068, %v2100
        %v2117 = vsel %vm2085, %v2069, %v2101
        %v2118 = vsel %vm2086, %v2070, %v2102
        %v2119 = vsel %vm2087, %v2071, %v2103
        %v2120 = vsel %vm2088, %v2072, %v2104
        %v2121 = vsel %vm2089, %v2073, %v2105
        %v2122 = vsel %vm2090, %v2074, %v2106
        %v2123 = vsel %vm2091, %v2075, %v2107
        %v2124 = vsel %vm2092, %v2076, %v2108
        %v2125 = vsel %vm2093, %v2077, %v2109
        %v2126 = vpack.c.bf16 %v2111, %v2110
        %v2127 = vpack.c.bf16 %v2113, %v2112
        %v2128 = vpack.c.bf16 %v2115, %v2114
        %v2129 = vpack.c.bf16 %v2117, %v2116
        %v2130 = vpack.c.bf16 %v2119, %v2118
        %v2131 = vpack.c.bf16 %v2121, %v2120
        %v2132 = vpack.c.bf16 %v2123, %v2122
        %v2133 = vpack.c.bf16 %v2125, %v2124
        %v2142 = vunpack.c.l.b16 %v2126
        %v2143 = vunpack.c.h.b16 %v2126
        %v2144 = vunpack.c.l.b16 %v2127
        %v2145 = vunpack.c.h.b16 %v2127
        %v2146 = vunpack.c.l.b16 %v2128
        %v2147 = vunpack.c.h.b16 %v2128
        %v2148 = vunpack.c.l.b16 %v2129
        %v2149 = vunpack.c.h.b16 %v2129
        %v2150 = vunpack.c.l.b16 %v2130
        %v2151 = vunpack.c.h.b16 %v2130
        %v2152 = vunpack.c.l.b16 %v2131
        %v2153 = vunpack.c.h.b16 %v2131
        %v2154 = vunpack.c.l.b16 %v2132
        %v2155 = vunpack.c.h.b16 %v2132
        %v2156 = vunpack.c.l.b16 %v2133
        %v2157 = vunpack.c.h.b16 %v2133
        %v2158 = vpack.c.b16 %v2142, %v2142
        %v2159 = vpack.c.b16 %v2143, %v2143
        %v2160 = vpack.c.b16 %v2144, %v2144
        %v2161 = vpack.c.b16 %v2145, %v2145
        %v2162 = vpack.c.b16 %v2146, %v2146
        %v2163 = vpack.c.b16 %v2147, %v2147
        %v2164 = vpack.c.b16 %v2148, %v2148
        %v2165 = vpack.c.b16 %v2149, %v2149
        %v2166 = vpack.c.b16 %v2150, %v2150
        %v2167 = vpack.c.b16 %v2151, %v2151
        %v2168 = vpack.c.b16 %v2152, %v2152
        %v2169 = vpack.c.b16 %v2153, %v2153
        %v2170 = vpack.c.b16 %v2154, %v2154
        %v2171 = vpack.c.b16 %v2155, %v2155
        %v2172 = vpack.c.b16 %v2156, %v2156
        %v2173 = vpack.c.b16 %v2157, %v2157
        %v2190 = vadd.bf16 %v398, %v2158
        %v2191 = vadd.bf16 %v399, %v2159
        %v2192 = vadd.bf16 %v400, %v2160
        %v2193 = vadd.bf16 %v401, %v2161
        %v2194 = vadd.bf16 %v402, %v2162
        %v2195 = vadd.bf16 %v403, %v2163
        %v2196 = vadd.bf16 %v404, %v2164
        %v2197 = vadd.bf16 %v405, %v2165
        %v2198 = vadd.bf16 %v406, %v2166
        %v2199 = vadd.bf16 %v407, %v2167
        %v2200 = vadd.bf16 %v408, %v2168
        %v2201 = vadd.bf16 %v409, %v2169
        %v2202 = vadd.bf16 %v410, %v2170
        %v2203 = vadd.bf16 %v411, %v2171
        %v2204 = vadd.bf16 %v412, %v2172
        %v2205 = vadd.bf16 %v413, %v2173
        %2206 = vst [vmem:[%s384] sm:$0xf] %v2190
        %2207 = vst [vmem:[%s384 + $0x4] sm:$0xf] %v2191
        %2208 = vst [vmem:[%s384 + $0x8] sm:$0xf] %v2192
        %2209 = vst [vmem:[%s384 + $0xc] sm:$0xf] %v2193
        %2210 = vst [vmem:[%s384 + $0x10] sm:$0xf] %v2194
        %2211 = vst [vmem:[%s384 + $0x14] sm:$0xf] %v2195
        %2212 = vst [vmem:[%s384 + $0x18] sm:$0xf] %v2196
        %2213 = vst [vmem:[%s384 + $0x1c] sm:$0xf] %v2197
        %2214 = vst [vmem:[%s384 + $0x20] sm:$0xf] %v2198
        %2215 = vst [vmem:[%s384 + $0x24] sm:$0xf] %v2199
        %2216 = vst [vmem:[%s384 + $0x28] sm:$0xf] %v2200
        %2217 = vst [vmem:[%s384 + $0x2c] sm:$0xf] %v2201
        %2218 = vst [vmem:[%s384 + $0x30] sm:$0xf] %v2202
        %2219 = vst [vmem:[%s384 + $0x34] sm:$0xf] %v2203
        %2220 = vst [vmem:[%s384 + $0x38] sm:$0xf] %v2204
        %2221 = vst [vmem:[%s384 + $0x3c] sm:$0xf] %v2205
        %s2222 = sand.u32 %s190, 1
        %s2223 = scalar_lea.sflag [#allocation5], %s2222
        %s2224 = sand.u32 %s190, 1
        %s2225 = smul.addr %s2224, 64
        %s2226 = scalar_lea.vmem [#allocation11], %s2225
        // Predicated region
        $region65: #{res_conv1d_nlc.1} parent=39 // pred_check
          %p2227 = pneg %p200
        $region66: #{res_conv1d_nlc.1} parent=39 // pred_check_branch
          %2229 = sbr.rel (%p2227) target = $region68
        $region67: #{res_conv1d_nlc.1} parent=39 // pred_region
          %s2230 = smul.u32 16, %s31
          %s2232 = ssub.s32 1024, 1024
          %2233 = vsyncadd %s2223, %s2232
          %s2234 = smul.addr %s30, 48
          %s2235 = sadd.s32 %s2230, %s2234
          %s2236 = smul.addr %s2235, 64
          %s2237 = scalar_lea.hbm %s5, %s2236
          %s2238 = sshll.u32 %s2226, 4
          %s2239 = int_to_ptr.vmem [resolvable:$true] %s2238
          %2244 = dma.vmem_to_hbm [thread:$0]  %s2239, 1024, %s2237, %s2223, 64, 64, 4
        $region68: #{res_conv1d_nlc.1} parent=39 // pred_fallthru
          _
      $region40: #{res_conv1d_nlc.1} parent=5 // pred_fallthru
        _
      %p2245 = scmp.le.s32.totalorder 2, %s21
      // Predicated region
      $region69: #{res_conv1d_nlc.1} parent=5 // pred_check
        %p2246 = pneg %p2245
      $region70: #{res_conv1d_nlc.1} parent=5 // pred_check_branch
        %2248 = sbr.rel (%p2246) target = $region72
      $region71: #{res_conv1d_nlc.1} parent=5 // pred_region
        %s2249 = ssub.s32 %s21, 2
        // Predicated region
        $region73: #{res_conv1d_nlc.1} parent=71 // pred_check
          %p2250 = pneg %p206
        $region74: #{res_conv1d_nlc.1} parent=71 // pred_check_branch
          %2252 = sbr.rel (%p2250) target = $region76
        $region75: #{res_conv1d_nlc.1} parent=71 // pred_region
          %s2253 = sand.u32 %s191, 1
          %s2254 = scalar_lea.sflag [#allocation5], %s2253
          %s2255 = sand.u32 %s191, 1
          %s2256 = smul.addr %s2255, 64
          %s2257 = scalar_lea.vmem [#allocation11], %s2256
          %2258 = dma.done %s2254, 1024
        $region76: #{res_conv1d_nlc.1} parent=71 // pred_fallthru
          _
      $region72: #{res_conv1d_nlc.1} parent=5 // pred_fallthru
        _
    $region6: #{res_conv1d_nlc.1} parent=1 // loop_footer
      %s25 = sadd.s32 1, %s21
    $region7: #{res_conv1d_nlc.1} parent=1 // loop_footer_branch
      %20 = sbr.rel target = $region3
    $region8: #{res_conv1d_nlc.1} parent=1 // loop_exit
      _
    %2259 = vsyncpa [#allocation4], 1
    %s2260 = scalar_lea.sflag [#allocation4], 1
    %2261 = vsyncpa %s2260, 1
    %2262 = vsyncpa [#allocation7], 1
    %s2263 = scalar_lea.sflag [#allocation7], 1
    %2264 = vsyncpa %s2263, 1
    %2265 = vsyncpa [#allocation10], 1
    %2266 = vsyncpa [#allocation5], 1
    %s2267 = scalar_lea.sflag [#allocation5], 1
    %2268 = vsyncpa %s2267, 1

</llo_original>
